<compile_context>
chip_gen: v5e
topology: v5e:2x2
jax: 0.10.0
libtpu: 0.0.40
codegen_flags: <defaults>
</compile_context>

<pallas_src>
import functools
import math

import jax
import jax.numpy as jnp
from jax.experimental import pallas as pl
from jax.experimental.pallas import tpu as pltpu  # noqa: F401  (kept for future tiling params)

# ---------------------------------------------------------------- constants
B = 2          # batch
C, H, W = 3, 32, 32
P = 16         # ViT patch size
Np = (H // P) * (W // P)       # 4 patches
S_vis = Np + 1                 # + CLS token
CPP = C * P * P                # flattened patch
Dv = 32        # ViT hidden size (stand-in for 768)
F = 48         # num_features (stand-in for 1408)
Qn = 8         # num_query_token (stand-in for 32)
Dq = 32        # Q-Former hidden (stand-in for 768)
DH = 32        # Q-Former attention head dim
Dt = 32        # T5 hidden (stand-in for 1024 of t5-3b)
V = 64         # T5 vocab (stand-in for 32128)
T_IN = 6       # input text length
T_OUT = 5      # output text length
S_ENC = Qn + T_IN
PAD_ID = 0     # T5 pad token id


# ================================================================ kernel 1
# fused vision path: patch-embed linear -> +CLS/pos -> fc1 -> ln_vision
# (single program, batch handled as a short unrolled loop of 2-D MXU matmuls;
#  intermediates never leave VMEM/vregs).
def _vision_kernel(x_ref, pw_ref, pb_ref, cls_ref, pos_ref, f1w_ref, f1b_ref,
                   g_ref, bb_ref, o_ref, *, batch):
    pw = pw_ref[...]                       # (CPP, Dv) f32
    pb = pb_ref[...]                       # (1, Dv)
    f1w = f1w_ref[...]                     # (Dv, F)
    f1b = f1b_ref[...]                     # (1, F)
    g = g_ref[...]                         # (1, F)
    bb = bb_ref[...]                       # (1, F)
    pos = pos_ref[...]                     # (S_vis, Dv)
    cls_b = jnp.broadcast_to(cls_ref[...], (S_vis, Dv))        # hoisted
    row = jax.lax.broadcasted_iota(jnp.int32, (S_vis, Dv), 0)  # hoisted

    for b in range(batch):                 # B is tiny -> unrolled
        x = x_ref[b]                       # (S_vis, CPP); row 0 is zero-padded CLS slot
        pe = jnp.dot(x, pw, preferred_element_type=jnp.float32) + pb
        # row 0 = CLS token, rows 1.. = patch embeddings; then add positional emb.
        last = jnp.where(row == 0, cls_b, pe) + pos            # (S_vis, Dv)
        vis = jnp.dot(last, f1w, preferred_element_type=jnp.float32) + f1b  # (S_vis, F)
        mu = jnp.mean(vis, axis=-1, keepdims=True)
        var = jnp.mean((vis - mu) ** 2, axis=-1, keepdims=True)
        y = (vis - mu) * jax.lax.rsqrt(var + 1e-5)
        o_ref[b] = y * g + bb


def vision_pallas(p, x_ext):
    Bc = x_ext.shape[0]
    kernel = functools.partial(_vision_kernel, batch=Bc)
    return pl.pallas_call(
        kernel,
        out_shape=jax.ShapeDtypeStruct((Bc, S_vis, F), jnp.float32),
    )(x_ext, p["patch_w"], p["patch_b"].reshape(1, Dv),
      p["cls"].reshape(1, Dv), p["pos"].reshape(S_vis, Dv),
      p["fc1_w"], p["fc1_b"].reshape(1, F),
      p["ln_g"].reshape(1, F), p["ln_b"].reshape(1, F))


# ================================================================ kernel 2
# fused Q-Former stub (query -> image cross-attention) + t5_proj.
# image_atts is always all-ones in this forward, so no additive mask is needed.
# attention scale 1/sqrt(DH) is pre-folded into qf_wq at init.
def _qformer_proj_kernel(q_ref, img_ref, wq_ref, wk_ref, wv_ref, wo_ref,
                         pjw_ref, pjb_ref, o_ref, *, batch):
    wk = wk_ref[...]; wv = wv_ref[...]; wo = wo_ref[...]
    pjw = pjw_ref[...]; pjb = pjb_ref[...]
    # query tokens are shared across the batch -> project once.
    qh = jnp.dot(q_ref[...], wq_ref[...],
                 preferred_element_type=jnp.float32)            # (Qn, DH)

    for b in range(batch):
        kv = img_ref[b]                                         # (S_vis, F) f32
        kh = jnp.dot(kv, wk, preferred_element_type=jnp.float32)
        vh = jnp.dot(kv, wv, preferred_element_type=jnp.float32)
        s = jax.lax.dot_general(qh, kh, (((1,), (1,)), ((), ())),
                                preferred_element_type=jnp.float32)  # (Qn, S_vis)
        s = s - jnp.max(s, axis=-1, keepdims=True)
        e = jnp.exp(s)
        pr = e * pl.reciprocal(jnp.sum(e, axis=-1, keepdims=True), approx=True)
        ctx = jnp.dot(pr, vh, preferred_element_type=jnp.float32)
        attn = jnp.dot(ctx, wo, preferred_element_type=jnp.float32)   # (Qn, Dq)
        t5 = jnp.dot(attn, pjw, preferred_element_type=jnp.float32) + pjb
        o_ref[b] = t5.astype(o_ref.dtype)                       # -> bf16 for the T5 path


def qformer_proj_pallas(p, image_embeds):
    Bc = image_embeds.shape[0]
    kernel = functools.partial(_qformer_proj_kernel, batch=Bc)
    return pl.pallas_call(
        kernel,
        out_shape=jax.ShapeDtypeStruct((Bc, Qn, Dt), jnp.bfloat16),
    )(p["query_tokens"].reshape(Qn, Dq), image_embeds,
      p["qf_wq"], p["qf_wk"], p["qf_wv"], p["qf_wo"],
      p["t5_proj_w"], p["t5_proj_b"].reshape(1, Dt))


# ================================================================ kernel 3
# fused T5 stub: bf16 encoder linear -> decoder cross-attention (masked) ->
# tied LM head (contract against the embedding table, no transpose) ->
# masked cross-entropy with the mean computed in-kernel.
# All MXU operands stay bf16; accumulation / softmax / loss math in f32.
#
# TODO(synk): at real BLIP-2 / T5-3B sizes (V=32128, Dt>=1024) the LM-head
# matmul must be tiled over the vocab axis with a (rows, vocab) grid, a f32
# VMEM accumulator and a leading "parallel" batch/seq axis (v7x megacore),
# with tile sizes re-derived for v7x's 64 MiB VMEM.  At stand-in sizes a
# single gridless program is fastest (everything fits in a few vregs).
def _t5_stub_kernel(x_ref, m_ref, d_ref, t_ref, ew_ref, eb_ref,
                    wq_ref, wk_ref, wv_ref, wo_ref, emb_ref,
                    logits_ref, loss_ref, *, batch):
    ew = ew_ref[...]                                   # (Dt, Dt) bf16
    eb = eb_ref[...].astype(jnp.float32)               # (1, Dt)
    wq = wq_ref[...]; wk = wk_ref[...]; wv = wv_ref[...]; wo = wo_ref[...]
    emb = emb_ref[...]                                 # (V, Dt) bf16
    col = jax.lax.broadcasted_iota(jnp.int32, (T_OUT, V), 1)   # hoisted

    loss_sum = jnp.zeros((1, 1), jnp.float32)
    cnt = jnp.zeros((1, 1), jnp.float32)

    for b in range(batch):
        # --- encoder stub: one bf16 linear, f32 accumulation -------------
        x = x_ref[b]                                   # (S_ENC, Dt) bf16
        enc = (jnp.dot(x, ew, preferred_element_type=jnp.float32)
               + eb).astype(jnp.bfloat16)              # (S_ENC, Dt) bf16

        # --- decoder cross-attention (dec_wq pre-scaled by 1/sqrt(Dt)) ----
        d = d_ref[b]                                   # (T_OUT, Dt) bf16
        mask = m_ref[b]                                # (1, S_ENC) f32
        qh = jnp.dot(d, wq, preferred_element_type=jnp.float32).astype(jnp.bfloat16)
        kh = jnp.dot(enc, wk, preferred_element_type=jnp.float32).astype(jnp.bfloat16)
        vh = jnp.dot(enc, wv, preferred_element_type=jnp.float32).astype(jnp.bfloat16)
        s = jax.lax.dot_general(qh, kh, (((1,), (1,)), ((), ())),
                                preferred_element_type=jnp.float32)   # (T_OUT, S_ENC)
        # additive mask and max-subtract kept in f32 (bf16 cannot hold -1e9 safely);
        # first Qn columns are always unmasked, so no all-masked-row guard is needed.
        s = s + (mask - 1.0) * 1e9
        s = s - jnp.max(s, axis=-1, keepdims=True)
        e = jnp.exp(s)
        pr = e * pl.reciprocal(jnp.sum(e, axis=-1, keepdims=True), approx=True)
        ctx = jnp.dot(pr.astype(jnp.bfloat16), vh,
                      preferred_element_type=jnp.float32)             # (T_OUT, Dt)
        attn = jnp.dot(ctx.astype(jnp.bfloat16), wo,
                       preferred_element_type=jnp.float32)            # (T_OUT, Dt)

        # --- tied LM head: contract Dt with Dt of the embedding table -----
        lg = jax.lax.dot_general(attn.astype(jnp.bfloat16), emb,
                                 (((1,), (1,)), ((), ())),
                                 preferred_element_type=jnp.float32)  # (T_OUT, V) f32
        logits_ref[b] = lg

        # --- masked token-mean cross entropy (ignore_index == -100) -------
        t = t_ref[b]                                   # (T_OUT, 1) int32
        mx = jnp.max(lg, axis=-1, keepdims=True)
        z = lg - mx
        lse = jnp.log(jnp.sum(jnp.exp(z), axis=-1, keepdims=True))
        tgt_logp = jnp.sum(jnp.where(col == t, z - lse, 0.0),
                           axis=-1, keepdims=True)     # (T_OUT, 1)
        valid = (t != -100).astype(jnp.float32)
        loss_sum = loss_sum - jnp.sum(valid * tgt_logp, keepdims=True)
        cnt = cnt + jnp.sum(valid, keepdims=True)

    loss_ref[...] = loss_sum / jnp.maximum(cnt, 1.0)


def t5_stub_pallas(p, inputs_embeds, enc_mask, dec_embeds, targets):
    Bc = inputs_embeds.shape[0]
    kernel = functools.partial(_t5_stub_kernel, batch=Bc)
    return pl.pallas_call(
        kernel,
        out_shape=(jax.ShapeDtypeStruct((Bc, T_OUT, V), jnp.float32),
                   jax.ShapeDtypeStruct((1, 1), jnp.float32)),
    )(inputs_embeds, enc_mask, dec_embeds, targets,
      p["t5_enc_w"], p["t5_enc_b"].reshape(1, Dt),
      p["dec_wq"], p["dec_wk"], p["dec_wv"], p["dec_wo"], p["t5_embed"])


# ---------------------------------------------------------------- parameters
def init_params(key):
    ks = jax.random.split(key, 16)
    std = 0.02  # encoder_config.initializer_range
    p = {}
    # visual encoder stub (patch embedding + cls + pos)
    p["patch_w"] = std * jax.random.normal(ks[0], (CPP, Dv), jnp.float32)
    p["patch_b"] = jnp.zeros((Dv,), jnp.float32)
    p["cls"] = std * jax.random.normal(ks[1], (1, 1, Dv), jnp.float32)
    p["pos"] = std * jax.random.normal(ks[2], (1, S_vis, Dv), jnp.float32)
    # fc1 : Linear(vit_hidden -> num_features)
    p["fc1_w"] = std * jax.random.normal(ks[3], (Dv, F), jnp.float32)
    p["fc1_b"] = jnp.zeros((F,), jnp.float32)
    # ln_vision : LayerNorm(num_features)
    p["ln_g"] = jnp.ones((F,), jnp.float32)
    p["ln_b"] = jnp.zeros((F,), jnp.float32)
    # query tokens (1, num_query_token, qformer_hidden), normal(0, 0.02)
    p["query_tokens"] = std * jax.random.normal(ks[4], (1, Qn, Dq), jnp.float32)
    # Q-Former stub cross-attention weights; 1/sqrt(DH) folded into wq.
    p["qf_wq"] = (std * jax.random.normal(ks[5], (Dq, DH), jnp.float32)
                  ) * (1.0 / math.sqrt(DH))
    p["qf_wk"] = std * jax.random.normal(ks[6], (F, DH), jnp.float32)
    p["qf_wv"] = std * jax.random.normal(ks[7], (F, DH), jnp.float32)
    p["qf_wo"] = std * jax.random.normal(ks[8], (DH, Dq), jnp.float32)
    # t5_proj : Linear(qformer_hidden -> t5_hidden)
    p["t5_proj_w"] = std * jax.random.normal(ks[9], (Dq, Dt), jnp.float32)
    p["t5_proj_b"] = jnp.zeros((Dt,), jnp.float32)
    # T5 stub (bfloat16, matching dtype_llm); 1/sqrt(Dt) folded into dec_wq.
    p["t5_embed"] = (std * jax.random.normal(ks[10], (V, Dt), jnp.float32)
                     ).astype(jnp.bfloat16)
    p["t5_enc_w"] = (std * jax.random.normal(ks[11], (Dt, Dt), jnp.float32)
                     ).astype(jnp.bfloat16)
    p["t5_enc_b"] = jnp.zeros((Dt,), jnp.bfloat16)
    p["dec_wq"] = ((std * jax.random.normal(ks[12], (Dt, Dt), jnp.float32))
                   * (1.0 / math.sqrt(Dt))).astype(jnp.bfloat16)
    p["dec_wk"] = (std * jax.random.normal(ks[13], (Dt, Dt), jnp.float32)
                   ).astype(jnp.bfloat16)
    p["dec_wv"] = (std * jax.random.normal(ks[14], (Dt, Dt), jnp.float32)
                   ).astype(jnp.bfloat16)
    p["dec_wo"] = (std * jax.random.normal(ks[15], (Dt, Dt), jnp.float32)
                   ).astype(jnp.bfloat16)
    return p


# ---------------------------------------------------------------- forward
@jax.jit
def blip2_forward(p, image, input_ids, input_mask, output_ids):
    Bc = image.shape[0]

    # ---- visual encoder + fc1 + ln_vision (fused kernel 1) ----------------
    # TODO(synk): full pretrained ViT transformer stack not reproducible;
    # patch-embedding + CLS + positional embedding stand-in only.
    patches = image.reshape(Bc, C, H // P, P, W // P, P)
    patches = patches.transpose(0, 2, 4, 1, 3, 5).reshape(Bc, Np, CPP)
    x_ext = jnp.pad(patches, ((0, 0), (1, 0), (0, 0)))      # row 0 = CLS slot
    image_embeds = vision_pallas(p, x_ext)                  # [B, S_vis, F] f32
    # image_atts == ones(B, S_vis): folded into kernel 2 (no mask needed).

    # ---- Q-Former stub + t5_proj (fused kernel 2, dtype_qf = f32) ---------
    # TODO(synk): full BertLMHeadModel Q-Former (text input + self-attention
    # layers) replaced by a single query->image cross-attention layer.
    inputs_t5 = qformer_proj_pallas(p, image_embeds)        # [B, Qn, Dt] bf16
    # atts_t5 == ones(B, Qn)

    # ---- T5 glue (embedding gathers / concat stay as cheap XLA ops) -------
    inputs_txt = jnp.take(p["t5_embed"], input_ids, axis=0)        # [B,T_IN,Dt] bf16
    inputs_embeds = jnp.concatenate([inputs_t5, inputs_txt], axis=1)  # [B,S_ENC,Dt]
    encoder_atts = jnp.concatenate(
        [jnp.ones((Bc, Qn), jnp.float32), input_mask.astype(jnp.float32)],
        axis=1)[:, None, :]                                         # [B,1,S_ENC]
    targets = jnp.where(output_ids == PAD_ID, -100, output_ids
                        ).astype(jnp.int32)[..., None]              # [B,T_OUT,1]
    dec_in_ids = jnp.concatenate(
        [jnp.zeros((Bc, 1), output_ids.dtype), output_ids[:, :-1]], axis=1)
    dec_embeds = jnp.take(p["t5_embed"], dec_in_ids, axis=0)        # [B,T_OUT,Dt]

    # ---- T5 stub + LM head + masked CE loss (fused kernel 3, bf16) --------
    # TODO(synk): T5-3B encoder/decoder + LoRA replaced by one bf16 encoder
    # linear + one decoder cross-attention + tied LM head; loss semantics
    # (pad -> -100, mean over valid tokens) are preserved.
    logits, loss11 = t5_stub_pallas(p, inputs_embeds, encoder_atts,
                                    dec_embeds, targets)
    return logits, loss11[0, 0]


# ---------------------------------------------------------------- main
if __name__ == "__main__":
    key = jax.random.PRNGKey(0)
    kp, ki, kin, kout = jax.random.split(key, 4)

    params = init_params(kp)

    image = jax.random.normal(ki, (B, C, H, W), jnp.float32)

    # deterministic stand-in for tokenizer outputs
    # TODO(synk): BertTokenizer / T5TokenizerFast are not reproducible in JAX.
    input_ids = jax.random.randint(kin, (B, T_IN), 3, V).astype(jnp.int32)
    input_ids = input_ids.at[1, T_IN - 1:].set(PAD_ID)          # some padding
    input_mask = (input_ids != PAD_ID).astype(jnp.int32)

    output_ids = jax.random.randint(kout, (B, T_OUT), 3, V).astype(jnp.int32)
    output_ids = output_ids.at[0, T_OUT - 2:].set(PAD_ID)       # some padding

    logits, loss = blip2_forward(params, image, input_ids, input_mask,
                                 output_ids)
    jax.block_until_ready((logits, loss))
    assert logits.shape == (B, T_OUT, V)
    assert jnp.isfinite(loss)
    print("KERNEL_OK")
</pallas_src>

<mosaic_0001>
module attributes {stable_mosaic.version = 11 : i64} {
  func.func @_qformer_proj_kernel(%arg0: memref<8x32xf32, #tpu.memory_space<vmem>>, %arg1: memref<2x5x48xf32, #tpu.memory_space<vmem>>, %arg2: memref<32x32xf32, #tpu.memory_space<vmem>>, %arg3: memref<48x32xf32, #tpu.memory_space<vmem>>, %arg4: memref<48x32xf32, #tpu.memory_space<vmem>>, %arg5: memref<32x32xf32, #tpu.memory_space<vmem>>, %arg6: memref<32x32xf32, #tpu.memory_space<vmem>>, %arg7: memref<1x32xf32, #tpu.memory_space<vmem>>, %arg8: memref<2x8x32xbf16, #tpu.memory_space<vmem>>) attributes {dimension_semantics = [], scalar_prefetch = 0 : i64, scratch_operands = 0 : i64, tpu.core_type = #tpu.core_type<tc>} {
    %c0 = arith.constant 0 : index
    %c0_0 = arith.constant 0 : index
    %0 = vector.load %arg3[%c0, %c0_0] : memref<48x32xf32, #tpu.memory_space<vmem>>, vector<48x32xf32>
    %c0_1 = arith.constant 0 : index
    %c0_2 = arith.constant 0 : index
    %1 = vector.load %arg4[%c0_1, %c0_2] : memref<48x32xf32, #tpu.memory_space<vmem>>, vector<48x32xf32>
    %c0_3 = arith.constant 0 : index
    %c0_4 = arith.constant 0 : index
    %2 = vector.load %arg5[%c0_3, %c0_4] : memref<32x32xf32, #tpu.memory_space<vmem>>, vector<32x32xf32>
    %c0_5 = arith.constant 0 : index
    %c0_6 = arith.constant 0 : index
    %3 = vector.load %arg6[%c0_5, %c0_6] : memref<32x32xf32, #tpu.memory_space<vmem>>, vector<32x32xf32>
    %c0_7 = arith.constant 0 : index
    %c0_8 = arith.constant 0 : index
    %4 = vector.load %arg7[%c0_7, %c0_8] : memref<1x32xf32, #tpu.memory_space<vmem>>, vector<1x32xf32>
    %c0_9 = arith.constant 0 : index
    %c0_10 = arith.constant 0 : index
    %5 = vector.load %arg0[%c0_9, %c0_10] : memref<8x32xf32, #tpu.memory_space<vmem>>, vector<8x32xf32>
    %c0_11 = arith.constant 0 : index
    %c0_12 = arith.constant 0 : index
    %6 = vector.load %arg2[%c0_11, %c0_12] : memref<32x32xf32, #tpu.memory_space<vmem>>, vector<32x32xf32>
    %cst = arith.constant dense<0.000000e+00> : vector<8x32xf32>
    %7 = tpu.matmul %5, %6, %cst {dimension_numbers = #tpu.dot_dimension_numbers<[1], [0], [0], [1], [0, 0, 1, 1], [], []>} : vector<8x32xf32>, vector<32x32xf32>, vector<8x32xf32> -> vector<8x32xf32>
    %c0_13 = arith.constant 0 : index
    %c0_14 = arith.constant 0 : index
    %c0_15 = arith.constant 0 : index
    %8 = vector.load %arg1[%c0_13, %c0_14, %c0_15] : memref<2x5x48xf32, #tpu.memory_space<vmem>>, vector<1x5x48xf32>
    %9 = vector.shape_cast %8 : vector<1x5x48xf32> to vector<5x48xf32>
    %cst_16 = arith.constant dense<0.000000e+00> : vector<5x32xf32>
    %10 = tpu.matmul %9, %0, %cst_16 {dimension_numbers = #tpu.dot_dimension_numbers<[1], [0], [0], [1], [0, 0, 1, 1], [], []>} : vector<5x48xf32>, vector<48x32xf32>, vector<5x32xf32> -> vector<5x32xf32>
    %cst_17 = arith.constant dense<0.000000e+00> : vector<5x32xf32>
    %11 = tpu.matmul %9, %1, %cst_17 {dimension_numbers = #tpu.dot_dimension_numbers<[1], [0], [0], [1], [0, 0, 1, 1], [], []>} : vector<5x48xf32>, vector<48x32xf32>, vector<5x32xf32> -> vector<5x32xf32>
    %cst_18 = arith.constant dense<0.000000e+00> : vector<8x5xf32>
    %12 = tpu.matmul %7, %10, %cst_18 {dimension_numbers = #tpu.dot_dimension_numbers<[1], [1], [0], [0], [0, 0, 1, 0], [], []>} : vector<8x32xf32>, vector<5x32xf32>, vector<8x5xf32> -> vector<8x5xf32>
    %cst_19 = arith.constant dense<0xFF800000> : vector<8xf32>
    %13 = vector.multi_reduction <maximumf>, %12, %cst_19 [1] : vector<8x5xf32> to vector<8xf32>
    %14 = vector.shape_cast %13 : vector<8xf32> to vector<8x1xf32>
    %15 = vector.broadcast %14 : vector<8x1xf32> to vector<8x5xf32>
    %16 = arith.subf %12, %15 : vector<8x5xf32>
    %17 = math.exp %16 : vector<8x5xf32>
    %cst_20 = arith.constant dense<0.000000e+00> : vector<8xf32>
    %18 = vector.multi_reduction <add>, %17, %cst_20 [1] : vector<8x5xf32> to vector<8xf32>
    %19 = vector.shape_cast %18 : vector<8xf32> to vector<8x1xf32>
    %20 = tpu.reciprocal %19 {approx = true} : vector<8x1xf32> -> vector<8x1xf32>
    %21 = vector.broadcast %20 : vector<8x1xf32> to vector<8x5xf32>
    %22 = arith.mulf %17, %21 : vector<8x5xf32>
    %cst_21 = arith.constant dense<0.000000e+00> : vector<8x32xf32>
    %23 = tpu.matmul %22, %11, %cst_21 {dimension_numbers = #tpu.dot_dimension_numbers<[1], [0], [0], [1], [0, 0, 1, 1], [], []>} : vector<8x5xf32>, vector<5x32xf32>, vector<8x32xf32> -> vector<8x32xf32>
    %cst_22 = arith.constant dense<0.000000e+00> : vector<8x32xf32>
    %24 = tpu.matmul %23, %2, %cst_22 {dimension_numbers = #tpu.dot_dimension_numbers<[1], [0], [0], [1], [0, 0, 1, 1], [], []>} : vector<8x32xf32>, vector<32x32xf32>, vector<8x32xf32> -> vector<8x32xf32>
    %cst_23 = arith.constant dense<0.000000e+00> : vector<8x32xf32>
    %25 = tpu.matmul %24, %3, %cst_23 {dimension_numbers = #tpu.dot_dimension_numbers<[1], [0], [0], [1], [0, 0, 1, 1], [], []>} : vector<8x32xf32>, vector<32x32xf32>, vector<8x32xf32> -> vector<8x32xf32>
    %26 = vector.broadcast %4 : vector<1x32xf32> to vector<8x32xf32>
    %27 = arith.addf %25, %26 : vector<8x32xf32>
    %28 = arith.truncf %27 : vector<8x32xf32> to vector<8x32xbf16>
    %c0_24 = arith.constant 0 : index
    %c0_25 = arith.constant 0 : index
    %c0_26 = arith.constant 0 : index
    %29 = vector.load %arg8[%c0_24, %c0_25, %c0_26] : memref<2x8x32xbf16, #tpu.memory_space<vmem>>, vector<1x8x32xbf16>
    %30 = vector.shape_cast %29 : vector<1x8x32xbf16> to vector<8x32xbf16>
    %31 = vector.shape_cast %28 : vector<8x32xbf16> to vector<1x8x32xbf16>
    tpu.vector_store %arg8[%c0_24, %c0_25, %c0_26], %31 {strides = array<i32>} : memref<2x8x32xbf16, #tpu.memory_space<vmem>>, vector<1x8x32xbf16>,
    %c1 = arith.constant 1 : index
    %c0_27 = arith.constant 0 : index
    %c0_28 = arith.constant 0 : index
    %32 = vector.load %arg1[%c1, %c0_27, %c0_28] : memref<2x5x48xf32, #tpu.memory_space<vmem>>, vector<1x5x48xf32>
    %33 = vector.shape_cast %32 : vector<1x5x48xf32> to vector<5x48xf32>
    %cst_29 = arith.constant dense<0.000000e+00> : vector<5x32xf32>
    %34 = tpu.matmul %33, %0, %cst_29 {dimension_numbers = #tpu.dot_dimension_numbers<[1], [0], [0], [1], [0, 0, 1, 1], [], []>} : vector<5x48xf32>, vector<48x32xf32>, vector<5x32xf32> -> vector<5x32xf32>
    %cst_30 = arith.constant dense<0.000000e+00> : vector<5x32xf32>
    %35 = tpu.matmul %33, %1, %cst_30 {dimension_numbers = #tpu.dot_dimension_numbers<[1], [0], [0], [1], [0, 0, 1, 1], [], []>} : vector<5x48xf32>, vector<48x32xf32>, vector<5x32xf32> -> vector<5x32xf32>
    %cst_31 = arith.constant dense<0.000000e+00> : vector<8x5xf32>
    %36 = tpu.matmul %7, %34, %cst_31 {dimension_numbers = #tpu.dot_dimension_numbers<[1], [1], [0], [0], [0, 0, 1, 0], [], []>} : vector<8x32xf32>, vector<5x32xf32>, vector<8x5xf32> -> vector<8x5xf32>
    %cst_32 = arith.constant dense<0xFF800000> : vector<8xf32>
    %37 = vector.multi_reduction <maximumf>, %36, %cst_32 [1] : vector<8x5xf32> to vector<8xf32>
    %38 = vector.shape_cast %37 : vector<8xf32> to vector<8x1xf32>
    %39 = vector.broadcast %38 : vector<8x1xf32> to vector<8x5xf32>
    %40 = arith.subf %36, %39 : vector<8x5xf32>
    %41 = math.exp %40 : vector<8x5xf32>
    %cst_33 = arith.constant dense<0.000000e+00> : vector<8xf32>
    %42 = vector.multi_reduction <add>, %41, %cst_33 [1] : vector<8x5xf32> to vector<8xf32>
    %43 = vector.shape_cast %42 : vector<8xf32> to vector<8x1xf32>
    %44 = tpu.reciprocal %43 {approx = true} : vector<8x1xf32> -> vector<8x1xf32>
    %45 = vector.broadcast %44 : vector<8x1xf32> to vector<8x5xf32>
    %46 = arith.mulf %41, %45 : vector<8x5xf32>
    %cst_34 = arith.constant dense<0.000000e+00> : vector<8x32xf32>
    %47 = tpu.matmul %46, %35, %cst_34 {dimension_numbers = #tpu.dot_dimension_numbers<[1], [0], [0], [1], [0, 0, 1, 1], [], []>} : vector<8x5xf32>, vector<5x32xf32>, vector<8x32xf32> -> vector<8x32xf32>
    %cst_35 = arith.constant dense<0.000000e+00> : vector<8x32xf32>
    %48 = tpu.matmul %47, %2, %cst_35 {dimension_numbers = #tpu.dot_dimension_numbers<[1], [0], [0], [1], [0, 0, 1, 1], [], []>} : vector<8x32xf32>, vector<32x32xf32>, vector<8x32xf32> -> vector<8x32xf32>
    %cst_36 = arith.constant dense<0.000000e+00> : vector<8x32xf32>
    %49 = tpu.matmul %48, %3, %cst_36 {dimension_numbers = #tpu.dot_dimension_numbers<[1], [0], [0], [1], [0, 0, 1, 1], [], []>} : vector<8x32xf32>, vector<32x32xf32>, vector<8x32xf32> -> vector<8x32xf32>
    %50 = vector.broadcast %4 : vector<1x32xf32> to vector<8x32xf32>
    %51 = arith.addf %49, %50 : vector<8x32xf32>
    %52 = arith.truncf %51 : vector<8x32xf32> to vector<8x32xbf16>
    %c1_37 = arith.constant 1 : index
    %c0_38 = arith.constant 0 : index
    %c0_39 = arith.constant 0 : index
    %53 = vector.load %arg8[%c1_37, %c0_38, %c0_39] : memref<2x8x32xbf16, #tpu.memory_space<vmem>>, vector<1x8x32xbf16>
    %54 = vector.shape_cast %53 : vector<1x8x32xbf16> to vector<8x32xbf16>
    %55 = vector.shape_cast %52 : vector<8x32xbf16> to vector<1x8x32xbf16>
    tpu.vector_store %arg8[%c1_37, %c0_38, %c0_39], %55 {strides = array<i32>} : memref<2x8x32xbf16, #tpu.memory_space<vmem>>, vector<1x8x32xbf16>,
    return
  }
}

module attributes {stable_mosaic.version = 11 : i64} {
  func.func @_vision_kernel(%arg0: memref<2x5x768xf32, #tpu.memory_space<vmem>>, %arg1: memref<768x32xf32, #tpu.memory_space<vmem>>, %arg2: memref<1x32xf32, #tpu.memory_space<vmem>>, %arg3: memref<1x32xf32, #tpu.memory_space<vmem>>, %arg4: memref<5x32xf32, #tpu.memory_space<vmem>>, %arg5: memref<32x48xf32, #tpu.memory_space<vmem>>, %arg6: memref<1x48xf32, #tpu.memory_space<vmem>>, %arg7: memref<1x48xf32, #tpu.memory_space<vmem>>, %arg8: memref<1x48xf32, #tpu.memory_space<vmem>>, %arg9: memref<2x5x48xf32, #tpu.memory_space<vmem>>) attributes {dimension_semantics = [], scalar_prefetch = 0 : i64, scratch_operands = 0 : i64, tpu.core_type = #tpu.core_type<tc>} {
    %c0 = arith.constant 0 : index
    %c0_0 = arith.constant 0 : index
    %0 = vector.load %arg1[%c0, %c0_0] : memref<768x32xf32, #tpu.memory_space<vmem>>, vector<768x32xf32>
    %c0_1 = arith.constant 0 : index
    %c0_2 = arith.constant 0 : index
    %1 = vector.load %arg2[%c0_1, %c0_2] : memref<1x32xf32, #tpu.memory_space<vmem>>, vector<1x32xf32>
    %c0_3 = arith.constant 0 : index
    %c0_4 = arith.constant 0 : index
    %2 = vector.load %arg5[%c0_3, %c0_4] : memref<32x48xf32, #tpu.memory_space<vmem>>, vector<32x48xf32>
    %c0_5 = arith.constant 0 : index
    %c0_6 = arith.constant 0 : index
    %3 = vector.load %arg6[%c0_5, %c0_6] : memref<1x48xf32, #tpu.memory_space<vmem>>, vector<1x48xf32>
    %c0_7 = arith.constant 0 : index
    %c0_8 = arith.constant 0 : index
    %4 = vector.load %arg7[%c0_7, %c0_8] : memref<1x48xf32, #tpu.memory_space<vmem>>, vector<1x48xf32>
    %c0_9 = arith.constant 0 : index
    %c0_10 = arith.constant 0 : index
    %5 = vector.load %arg8[%c0_9, %c0_10] : memref<1x48xf32, #tpu.memory_space<vmem>>, vector<1x48xf32>
    %c0_11 = arith.constant 0 : index
    %c0_12 = arith.constant 0 : index
    %6 = vector.load %arg4[%c0_11, %c0_12] : memref<5x32xf32, #tpu.memory_space<vmem>>, vector<5x32xf32>
    %c0_13 = arith.constant 0 : index
    %c0_14 = arith.constant 0 : index
    %7 = vector.load %arg3[%c0_13, %c0_14] : memref<1x32xf32, #tpu.memory_space<vmem>>, vector<1x32xf32>
    %8 = vector.shape_cast %7 : vector<1x32xf32> to vector<1x32xf32>
    %9 = vector.broadcast %8 : vector<1x32xf32> to vector<5x32xf32>
    %10 = tpu.iota {dimensions = array<i32: 0>} : vector<5x32xi32>
    %c0_15 = arith.constant 0 : index
    %c0_16 = arith.constant 0 : index
    %c0_17 = arith.constant 0 : index
    %11 = vector.load %arg0[%c0_15, %c0_16, %c0_17] : memref<2x5x768xf32, #tpu.memory_space<vmem>>, vector<1x5x768xf32>
    %12 = vector.shape_cast %11 : vector<1x5x768xf32> to vector<5x768xf32>
    %cst = arith.constant dense<0.000000e+00> : vector<5x32xf32>
    %13 = tpu.matmul %12, %0, %cst {dimension_numbers = #tpu.dot_dimension_numbers<[1], [0], [0], [1], [0, 0, 1, 1], [], []>} : vector<5x768xf32>, vector<768x32xf32>, vector<5x32xf32> -> vector<5x32xf32>
    %14 = vector.broadcast %1 : vector<1x32xf32> to vector<5x32xf32>
    %15 = arith.addf %13, %14 : vector<5x32xf32>
    %c0_i32 = arith.constant 0 : i32
    %16 = vector.broadcast %c0_i32 : i32 to vector<5x32xi32>
    %17 = arith.cmpi eq, %10, %16 : vector<5x32xi32>
    %18 = arith.select %17, %9, %15 : vector<5x32xi1>, vector<5x32xf32>
    %19 = arith.addf %18, %6 : vector<5x32xf32>
    %cst_18 = arith.constant dense<0.000000e+00> : vector<5x48xf32>
    %20 = tpu.matmul %19, %2, %cst_18 {dimension_numbers = #tpu.dot_dimension_numbers<[1], [0], [0], [1], [0, 0, 1, 1], [], []>} : vector<5x32xf32>, vector<32x48xf32>, vector<5x48xf32> -> vector<5x48xf32>
    %21 = vector.broadcast %3 : vector<1x48xf32> to vector<5x48xf32>
    %22 = arith.addf %20, %21 : vector<5x48xf32>
    %cst_19 = arith.constant dense<0.000000e+00> : vector<5xf32>
    %23 = vector.multi_reduction <add>, %22, %cst_19 [1] : vector<5x48xf32> to vector<5xf32>
    %24 = vector.shape_cast %23 : vector<5xf32> to vector<5x1xf32>
    %cst_20 = arith.constant 4.800000e+01 : f32
    %25 = vector.broadcast %cst_20 : f32 to vector<5x1xf32>
    %26 = arith.divf %24, %25 : vector<5x1xf32>
    %27 = vector.broadcast %26 : vector<5x1xf32> to vector<5x48xf32>
    %28 = arith.subf %22, %27 : vector<5x48xf32>
    %29 = arith.mulf %28, %28 : vector<5x48xf32>
    %cst_21 = arith.constant dense<0.000000e+00> : vector<5xf32>
    %30 = vector.multi_reduction <add>, %29, %cst_21 [1] : vector<5x48xf32> to vector<5xf32>
    %31 = vector.shape_cast %30 : vector<5xf32> to vector<5x1xf32>
    %cst_22 = arith.constant 4.800000e+01 : f32
    %32 = vector.broadcast %cst_22 : f32 to vector<5x1xf32>
    %33 = arith.divf %31, %32 : vector<5x1xf32>
    %34 = vector.broadcast %26 : vector<5x1xf32> to vector<5x48xf32>
    %35 = arith.subf %22, %34 : vector<5x48xf32>
    %cst_23 = arith.constant 9.99999974E-6 : f32
    %36 = vector.broadcast %cst_23 : f32 to vector<5x1xf32>
    %37 = arith.addf %33, %36 : vector<5x1xf32>
    %38 = math.rsqrt %37 : vector<5x1xf32>
    %39 = vector.broadcast %38 : vector<5x1xf32> to vector<5x48xf32>
    %40 = arith.mulf %35, %39 : vector<5x48xf32>
    %41 = vector.broadcast %4 : vector<1x48xf32> to vector<5x48xf32>
    %42 = arith.mulf %40, %41 : vector<5x48xf32>
    %43 = vector.broadcast %5 : vector<1x48xf32> to vector<5x48xf32>
    %44 = arith.addf %42, %43 : vector<5x48xf32>
    %c0_24 = arith.constant 0 : index
    %c0_25 = arith.constant 0 : index
    %c0_26 = arith.constant 0 : index
    %45 = vector.load %arg9[%c0_24, %c0_25, %c0_26] : memref<2x5x48xf32, #tpu.memory_space<vmem>>, vector<1x5x48xf32>
    %46 = vector.shape_cast %45 : vector<1x5x48xf32> to vector<5x48xf32>
    %47 = vector.shape_cast %44 : vector<5x48xf32> to vector<1x5x48xf32>
    tpu.vector_store %arg9[%c0_24, %c0_25, %c0_26], %47 {strides = array<i32>} : memref<2x5x48xf32, #tpu.memory_space<vmem>>, vector<1x5x48xf32>,
    %c1 = arith.constant 1 : index
    %c0_27 = arith.constant 0 : index
    %c0_28 = arith.constant 0 : index
    %48 = vector.load %arg0[%c1, %c0_27, %c0_28] : memref<2x5x768xf32, #tpu.memory_space<vmem>>, vector<1x5x768xf32>
    %49 = vector.shape_cast %48 : vector<1x5x768xf32> to vector<5x768xf32>
    %cst_29 = arith.constant dense<0.000000e+00> : vector<5x32xf32>
    %50 = tpu.matmul %49, %0, %cst_29 {dimension_numbers = #tpu.dot_dimension_numbers<[1], [0], [0], [1], [0, 0, 1, 1], [], []>} : vector<5x768xf32>, vector<768x32xf32>, vector<5x32xf32> -> vector<5x32xf32>
    %51 = vector.broadcast %1 : vector<1x32xf32> to vector<5x32xf32>
    %52 = arith.addf %50, %51 : vector<5x32xf32>
    %c0_i32_30 = arith.constant 0 : i32
    %53 = vector.broadcast %c0_i32_30 : i32 to vector<5x32xi32>
    %54 = arith.cmpi eq, %10, %53 : vector<5x32xi32>
    %55 = arith.select %54, %9, %52 : vector<5x32xi1>, vector<5x32xf32>
    %56 = arith.addf %55, %6 : vector<5x32xf32>
    %cst_31 = arith.constant dense<0.000000e+00> : vector<5x48xf32>
    %57 = tpu.matmul %56, %2, %cst_31 {dimension_numbers = #tpu.dot_dimension_numbers<[1], [0], [0], [1], [0, 0, 1, 1], [], []>} : vector<5x32xf32>, vector<32x48xf32>, vector<5x48xf32> -> vector<5x48xf32>
    %58 = vector.broadcast %3 : vector<1x48xf32> to vector<5x48xf32>
    %59 = arith.addf %57, %58 : vector<5x48xf32>
    %cst_32 = arith.constant dense<0.000000e+00> : vector<5xf32>
    %60 = vector.multi_reduction <add>, %59, %cst_32 [1] : vector<5x48xf32> to vector<5xf32>
    %61 = vector.shape_cast %60 : vector<5xf32> to vector<5x1xf32>
    %cst_33 = arith.constant 4.800000e+01 : f32
    %62 = vector.broadcast %cst_33 : f32 to vector<5x1xf32>
    %63 = arith.divf %61, %62 : vector<5x1xf32>
    %64 = vector.broadcast %63 : vector<5x1xf32> to vector<5x48xf32>
    %65 = arith.subf %59, %64 : vector<5x48xf32>
    %66 = arith.mulf %65, %65 : vector<5x48xf32>
    %cst_34 = arith.constant dense<0.000000e+00> : vector<5xf32>
    %67 = vector.multi_reduction <add>, %66, %cst_34 [1] : vector<5x48xf32> to vector<5xf32>
    %68 = vector.shape_cast %67 : vector<5xf32> to vector<5x1xf32>
    %cst_35 = arith.constant 4.800000e+01 : f32
    %69 = vector.broadcast %cst_35 : f32 to vector<5x1xf32>
    %70 = arith.divf %68, %69 : vector<5x1xf32>
    %71 = vector.broadcast %63 : vector<5x1xf32> to vector<5x48xf32>
    %72 = arith.subf %59, %71 : vector<5x48xf32>
    %cst_36 = arith.constant 9.99999974E-6 : f32
    %73 = vector.broadcast %cst_36 : f32 to vector<5x1xf32>
    %74 = arith.addf %70, %73 : vector<5x1xf32>
    %75 = math.rsqrt %74 : vector<5x1xf32>
    %76 = vector.broadcast %75 : vector<5x1xf32> to vector<5x48xf32>
    %77 = arith.mulf %72, %76 : vector<5x48xf32>
    %78 = vector.broadcast %4 : vector<1x48xf32> to vector<5x48xf32>
    %79 = arith.mulf %77, %78 : vector<5x48xf32>
    %80 = vector.broadcast %5 : vector<1x48xf32> to vector<5x48xf32>
    %81 = arith.addf %79, %80 : vector<5x48xf32>
    %c1_37 = arith.constant 1 : index
    %c0_38 = arith.constant 0 : index
    %c0_39 = arith.constant 0 : index
    %82 = vector.load %arg9[%c1_37, %c0_38, %c0_39] : memref<2x5x48xf32, #tpu.memory_space<vmem>>, vector<1x5x48xf32>
    %83 = vector.shape_cast %82 : vector<1x5x48xf32> to vector<5x48xf32>
    %84 = vector.shape_cast %81 : vector<5x48xf32> to vector<1x5x48xf32>
    tpu.vector_store %arg9[%c1_37, %c0_38, %c0_39], %84 {strides = array<i32>} : memref<2x5x48xf32, #tpu.memory_space<vmem>>, vector<1x5x48xf32>,
    return
  }
}

module attributes {stable_mosaic.version = 11 : i64} {
  func.func @_t5_stub_kernel(%arg0: memref<2x14x32xbf16, #tpu.memory_space<vmem>>, %arg1: memref<2x1x14xf32, #tpu.memory_space<vmem>>, %arg2: memref<2x5x32xbf16, #tpu.memory_space<vmem>>, %arg3: memref<2x5x1xi32, #tpu.memory_space<vmem>>, %arg4: memref<32x32xbf16, #tpu.memory_space<vmem>>, %arg5: memref<1x32xbf16, #tpu.memory_space<vmem>>, %arg6: memref<32x32xbf16, #tpu.memory_space<vmem>>, %arg7: memref<32x32xbf16, #tpu.memory_space<vmem>>, %arg8: memref<32x32xbf16, #tpu.memory_space<vmem>>, %arg9: memref<32x32xbf16, #tpu.memory_space<vmem>>, %arg10: memref<64x32xbf16, #tpu.memory_space<vmem>>, %arg11: memref<2x5x64xf32, #tpu.memory_space<vmem>>, %arg12: memref<1x1xf32, #tpu.memory_space<vmem>>) attributes {dimension_semantics = [], scalar_prefetch = 0 : i64, scratch_operands = 0 : i64, tpu.core_type = #tpu.core_type<tc>} {
    %c0 = arith.constant 0 : index
    %c0_0 = arith.constant 0 : index
    %0 = vector.load %arg4[%c0, %c0_0] : memref<32x32xbf16, #tpu.memory_space<vmem>>, vector<32x32xbf16>
    %c0_1 = arith.constant 0 : index
    %c0_2 = arith.constant 0 : index
    %1 = vector.load %arg5[%c0_1, %c0_2] : memref<1x32xbf16, #tpu.memory_space<vmem>>, vector<1x32xbf16>
    %2 = arith.extf %1 : vector<1x32xbf16> to vector<1x32xf32>
    %c0_3 = arith.constant 0 : index
    %c0_4 = arith.constant 0 : index
    %3 = vector.load %arg6[%c0_3, %c0_4] : memref<32x32xbf16, #tpu.memory_space<vmem>>, vector<32x32xbf16>
    %c0_5 = arith.constant 0 : index
    %c0_6 = arith.constant 0 : index
    %4 = vector.load %arg7[%c0_5, %c0_6] : memref<32x32xbf16, #tpu.memory_space<vmem>>, vector<32x32xbf16>
    %c0_7 = arith.constant 0 : index
    %c0_8 = arith.constant 0 : index
    %5 = vector.load %arg8[%c0_7, %c0_8] : memref<32x32xbf16, #tpu.memory_space<vmem>>, vector<32x32xbf16>
    %c0_9 = arith.constant 0 : index
    %c0_10 = arith.constant 0 : index
    %6 = vector.load %arg9[%c0_9, %c0_10] : memref<32x32xbf16, #tpu.memory_space<vmem>>, vector<32x32xbf16>
    %c0_11 = arith.constant 0 : index
    %c0_12 = arith.constant 0 : index
    %7 = vector.load %arg10[%c0_11, %c0_12] : memref<64x32xbf16, #tpu.memory_space<vmem>>, vector<64x32xbf16>
    %8 = tpu.iota {dimensions = array<i32: 1>} : vector<5x64xi32>
    %cst = arith.constant 0.000000e+00 : f32
    %9 = vector.broadcast %cst : f32 to vector<1x1xf32>
    %cst_13 = arith.constant 0.000000e+00 : f32
    %10 = vector.broadcast %cst_13 : f32 to vector<1x1xf32>
    %c0_14 = arith.constant 0 : index
    %c0_15 = arith.constant 0 : index
    %c0_16 = arith.constant 0 : index
    %11 = vector.load %arg0[%c0_14, %c0_15, %c0_16] : memref<2x14x32xbf16, #tpu.memory_space<vmem>>, vector<1x14x32xbf16>
    %12 = vector.shape_cast %11 : vector<1x14x32xbf16> to vector<14x32xbf16>
    %cst_17 = arith.constant dense<0.000000e+00> : vector<14x32xf32>
    %13 = tpu.matmul %12, %0, %cst_17 {dimension_numbers = #tpu.dot_dimension_numbers<[1], [0], [0], [1], [0, 0, 1, 1], [], []>} : vector<14x32xbf16>, vector<32x32xbf16>, vector<14x32xf32> -> vector<14x32xf32>
    %14 = vector.broadcast %2 : vector<1x32xf32> to vector<14x32xf32>
    %15 = arith.addf %13, %14 : vector<14x32xf32>
    %16 = arith.truncf %15 : vector<14x32xf32> to vector<14x32xbf16>
    %c0_18 = arith.constant 0 : index
    %c0_19 = arith.constant 0 : index
    %c0_20 = arith.constant 0 : index
    %17 = vector.load %arg2[%c0_18, %c0_19, %c0_20] : memref<2x5x32xbf16, #tpu.memory_space<vmem>>, vector<1x5x32xbf16>
    %18 = vector.shape_cast %17 : vector<1x5x32xbf16> to vector<5x32xbf16>
    %c0_21 = arith.constant 0 : index
    %c0_22 = arith.constant 0 : index
    %c0_23 = arith.constant 0 : index
    %19 = vector.load %arg1[%c0_21, %c0_22, %c0_23] : memref<2x1x14xf32, #tpu.memory_space<vmem>>, vector<1x1x14xf32>
    %20 = vector.shape_cast %19 : vector<1x1x14xf32> to vector<1x14xf32>
    %cst_24 = arith.constant dense<0.000000e+00> : vector<5x32xf32>
    %21 = tpu.matmul %18, %3, %cst_24 {dimension_numbers = #tpu.dot_dimension_numbers<[1], [0], [0], [1], [0, 0, 1, 1], [], []>} : vector<5x32xbf16>, vector<32x32xbf16>, vector<5x32xf32> -> vector<5x32xf32>
    %22 = arith.truncf %21 : vector<5x32xf32> to vector<5x32xbf16>
    %cst_25 = arith.constant dense<0.000000e+00> : vector<14x32xf32>
    %23 = tpu.matmul %16, %4, %cst_25 {dimension_numbers = #tpu.dot_dimension_numbers<[1], [0], [0], [1], [0, 0, 1, 1], [], []>} : vector<14x32xbf16>, vector<32x32xbf16>, vector<14x32xf32> -> vector<14x32xf32>
    %24 = arith.truncf %23 : vector<14x32xf32> to vector<14x32xbf16>
    %cst_26 = arith.constant dense<0.000000e+00> : vector<14x32xf32>
    %25 = tpu.matmul %16, %5, %cst_26 {dimension_numbers = #tpu.dot_dimension_numbers<[1], [0], [0], [1], [0, 0, 1, 1], [], []>} : vector<14x32xbf16>, vector<32x32xbf16>, vector<14x32xf32> -> vector<14x32xf32>
    %26 = arith.truncf %25 : vector<14x32xf32> to vector<14x32xbf16>
    %cst_27 = arith.constant dense<0.000000e+00> : vector<5x14xf32>
    %27 = tpu.matmul %22, %24, %cst_27 {dimension_numbers = #tpu.dot_dimension_numbers<[1], [1], [0], [0], [0, 0, 1, 0], [], []>} : vector<5x32xbf16>, vector<14x32xbf16>, vector<5x14xf32> -> vector<5x14xf32>
    %cst_28 = arith.constant 1.000000e+00 : f32
    %28 = vector.broadcast %cst_28 : f32 to vector<1x14xf32>
    %29 = arith.subf %20, %28 : vector<1x14xf32>
    %cst_29 = arith.constant 1.000000e+09 : f32
    %30 = vector.broadcast %cst_29 : f32 to vector<1x14xf32>
    %31 = arith.mulf %29, %30 : vector<1x14xf32>
    %32 = vector.broadcast %31 : vector<1x14xf32> to vector<5x14xf32>
    %33 = arith.addf %27, %32 : vector<5x14xf32>
    %cst_30 = arith.constant dense<0xFF800000> : vector<5xf32>
    %34 = vector.multi_reduction <maximumf>, %33, %cst_30 [1] : vector<5x14xf32> to vector<5xf32>
    %35 = vector.shape_cast %34 : vector<5xf32> to vector<5x1xf32>
    %36 = vector.broadcast %35 : vector<5x1xf32> to vector<5x14xf32>
    %37 = arith.subf %33, %36 : vector<5x14xf32>
    %38 = math.exp %37 : vector<5x14xf32>
    %cst_31 = arith.constant dense<0.000000e+00> : vector<5xf32>
    %39 = vector.multi_reduction <add>, %38, %cst_31 [1] : vector<5x14xf32> to vector<5xf32>
    %40 = vector.shape_cast %39 : vector<5xf32> to vector<5x1xf32>
    %41 = tpu.reciprocal %40 {approx = true} : vector<5x1xf32> -> vector<5x1xf32>
    %42 = vector.broadcast %41 : vector<5x1xf32> to vector<5x14xf32>
    %43 = arith.mulf %38, %42 : vector<5x14xf32>
    %44 = arith.truncf %43 : vector<5x14xf32> to vector<5x14xbf16>
    %cst_32 = arith.constant dense<0.000000e+00> : vector<5x32xf32>
    %45 = tpu.matmul %44, %26, %cst_32 {dimension_numbers = #tpu.dot_dimension_numbers<[1], [0], [0], [1], [0, 0, 1, 1], [], []>} : vector<5x14xbf16>, vector<14x32xbf16>, vector<5x32xf32> -> vector<5x32xf32>
    %46 = arith.truncf %45 : vector<5x32xf32> to vector<5x32xbf16>
    %cst_33 = arith.constant dense<0.000000e+00> : vector<5x32xf32>
    %47 = tpu.matmul %46, %6, %cst_33 {dimension_numbers = #tpu.dot_dimension_numbers<[1], [0], [0], [1], [0, 0, 1, 1], [], []>} : vector<5x32xbf16>, vector<32x32xbf16>, vector<5x32xf32> -> vector<5x32xf32>
    %48 = arith.truncf %47 : vector<5x32xf32> to vector<5x32xbf16>
    %cst_34 = arith.constant dense<0.000000e+00> : vector<5x64xf32>
    %49 = tpu.matmul %48, %7, %cst_34 {dimension_numbers = #tpu.dot_dimension_numbers<[1], [1], [0], [0], [0, 0, 1, 0], [], []>} : vector<5x32xbf16>, vector<64x32xbf16>, vector<5x64xf32> -> vector<5x64xf32>
    %c0_35 = arith.constant 0 : index
    %c0_36 = arith.constant 0 : index
    %c0_37 = arith.constant 0 : index
    %50 = vector.load %arg11[%c0_35, %c0_36, %c0_37] : memref<2x5x64xf32, #tpu.memory_space<vmem>>, vector<1x5x64xf32>
    %51 = vector.shape_cast %50 : vector<1x5x64xf32> to vector<5x64xf32>
    %52 = vector.shape_cast %49 : vector<5x64xf32> to vector<1x5x64xf32>
    tpu.vector_store %arg11[%c0_35, %c0_36, %c0_37], %52 {strides = array<i32>} : memref<2x5x64xf32, #tpu.memory_space<vmem>>, vector<1x5x64xf32>,
    %c0_38 = arith.constant 0 : index
    %c0_39 = arith.constant 0 : index
    %c0_40 = arith.constant 0 : index
    %53 = vector.load %arg3[%c0_38, %c0_39, %c0_40] : memref<2x5x1xi32, #tpu.memory_space<vmem>>, vector<1x5x1xi32>
    %54 = vector.shape_cast %53 : vector<1x5x1xi32> to vector<5x1xi32>
    %cst_41 = arith.constant dense<0xFF800000> : vector<5xf32>
    %55 = vector.multi_reduction <maximumf>, %49, %cst_41 [1] : vector<5x64xf32> to vector<5xf32>
    %56 = vector.shape_cast %55 : vector<5xf32> to vector<5x1xf32>
    %57 = vector.broadcast %56 : vector<5x1xf32> to vector<5x64xf32>
    %58 = arith.subf %49, %57 : vector<5x64xf32>
    %59 = math.exp %58 : vector<5x64xf32>
    %cst_42 = arith.constant dense<0.000000e+00> : vector<5xf32>
    %60 = vector.multi_reduction <add>, %59, %cst_42 [1] : vector<5x64xf32> to vector<5xf32>
    %61 = vector.shape_cast %60 : vector<5xf32> to vector<5x1xf32>
    %62 = math.log %61 : vector<5x1xf32>
    %63 = vector.broadcast %54 : vector<5x1xi32> to vector<5x64xi32>
    %64 = arith.cmpi eq, %8, %63 : vector<5x64xi32>
    %65 = vector.broadcast %62 : vector<5x1xf32> to vector<5x64xf32>
    %66 = arith.subf %58, %65 : vector<5x64xf32>
    %cst_43 = arith.constant 0.000000e+00 : f32
    %67 = vector.broadcast %cst_43 : f32 to vector<5x64xf32>
    %68 = arith.select %64, %66, %67 : vector<5x64xi1>, vector<5x64xf32>
    %cst_44 = arith.constant dense<0.000000e+00> : vector<5xf32>
    %69 = vector.multi_reduction <add>, %68, %cst_44 [1] : vector<5x64xf32> to vector<5xf32>
    %70 = vector.shape_cast %69 : vector<5xf32> to vector<5x1xf32>
    %c-100_i32 = arith.constant -100 : i32
    %71 = vector.broadcast %c-100_i32 : i32 to vector<5x1xi32>
    %72 = arith.cmpi ne, %54, %71 : vector<5x1xi32>
    %73 = arith.extui %72 : vector<5x1xi1> to vector<5x1xi32>
    %74 = arith.sitofp %73 : vector<5x1xi32> to vector<5x1xf32>
    %75 = arith.mulf %74, %70 : vector<5x1xf32>
    %76 = vector.shape_cast %75 : vector<5x1xf32> to vector<1x5x1xf32>
    %cst_45 = arith.constant dense<0.000000e+00> : vector<1xf32>
    %77 = vector.multi_reduction <add>, %76, %cst_45 [1, 2] : vector<1x5x1xf32> to vector<1xf32>
    %78 = vector.shape_cast %77 : vector<1xf32> to vector<1x1x1xf32>
    %79 = vector.extract %78[0, 0, 0] : f32 from vector<1x1x1xf32>
    %80 = vector.broadcast %79 : f32 to vector<1x1xf32>
    %81 = arith.subf %9, %80 : vector<1x1xf32>
    %82 = vector.shape_cast %74 : vector<5x1xf32> to vector<1x5x1xf32>
    %cst_46 = arith.constant dense<0.000000e+00> : vector<1xf32>
    %83 = vector.multi_reduction <add>, %82, %cst_46 [1, 2] : vector<1x5x1xf32> to vector<1xf32>
    %84 = vector.shape_cast %83 : vector<1xf32> to vector<1x1x1xf32>
    %85 = vector.extract %84[0, 0, 0] : f32 from vector<1x1x1xf32>
    %86 = vector.broadcast %85 : f32 to vector<1x1xf32>
    %87 = arith.addf %10, %86 : vector<1x1xf32>
    %c1 = arith.constant 1 : index
    %c0_47 = arith.constant 0 : index
    %c0_48 = arith.constant 0 : index
    %88 = vector.load %arg0[%c1, %c0_47, %c0_48] : memref<2x14x32xbf16, #tpu.memory_space<vmem>>, vector<1x14x32xbf16>
    %89 = vector.shape_cast %88 : vector<1x14x32xbf16> to vector<14x32xbf16>
    %cst_49 = arith.constant dense<0.000000e+00> : vector<14x32xf32>
    %90 = tpu.matmul %89, %0, %cst_49 {dimension_numbers = #tpu.dot_dimension_numbers<[1], [0], [0], [1], [0, 0, 1, 1], [], []>} : vector<14x32xbf16>, vector<32x32xbf16>, vector<14x32xf32> -> vector<14x32xf32>
    %91 = vector.broadcast %2 : vector<1x32xf32> to vector<14x32xf32>
    %92 = arith.addf %90, %91 : vector<14x32xf32>
    %93 = arith.truncf %92 : vector<14x32xf32> to vector<14x32xbf16>
    %c1_50 = arith.constant 1 : index
    %c0_51 = arith.constant 0 : index
    %c0_52 = arith.constant 0 : index
    %94 = vector.load %arg2[%c1_50, %c0_51, %c0_52] : memref<2x5x32xbf16, #tpu.memory_space<vmem>>, vector<1x5x32xbf16>
    %95 = vector.shape_cast %94 : vector<1x5x32xbf16> to vector<5x32xbf16>
    %c1_53 = arith.constant 1 : index
    %c0_54 = arith.constant 0 : index
    %c0_55 = arith.constant 0 : index
    %96 = vector.load %arg1[%c1_53, %c0_54, %c0_55] : memref<2x1x14xf32, #tpu.memory_space<vmem>>, vector<1x1x14xf32>
    %97 = vector.shape_cast %96 : vector<1x1x14xf32> to vector<1x14xf32>
    %cst_56 = arith.constant dense<0.000000e+00> : vector<5x32xf32>
    %98 = tpu.matmul %95, %3, %cst_56 {dimension_numbers = #tpu.dot_dimension_numbers<[1], [0], [0], [1], [0, 0, 1, 1], [], []>} : vector<5x32xbf16>, vector<32x32xbf16>, vector<5x32xf32> -> vector<5x32xf32>
    %99 = arith.truncf %98 : vector<5x32xf32> to vector<5x32xbf16>
    %cst_57 = arith.constant dense<0.000000e+00> : vector<14x32xf32>
    %100 = tpu.matmul %93, %4, %cst_57 {dimension_numbers = #tpu.dot_dimension_numbers<[1], [0], [0], [1], [0, 0, 1, 1], [], []>} : vector<14x32xbf16>, vector<32x32xbf16>, vector<14x32xf32> -> vector<14x32xf32>
    %101 = arith.truncf %100 : vector<14x32xf32> to vector<14x32xbf16>
    %cst_58 = arith.constant dense<0.000000e+00> : vector<14x32xf32>
    %102 = tpu.matmul %93, %5, %cst_58 {dimension_numbers = #tpu.dot_dimension_numbers<[1], [0], [0], [1], [0, 0, 1, 1], [], []>} : vector<14x32xbf16>, vector<32x32xbf16>, vector<14x32xf32> -> vector<14x32xf32>
    %103 = arith.truncf %102 : vector<14x32xf32> to vector<14x32xbf16>
    %cst_59 = arith.constant dense<0.000000e+00> : vector<5x14xf32>
    %104 = tpu.matmul %99, %101, %cst_59 {dimension_numbers = #tpu.dot_dimension_numbers<[1], [1], [0], [0], [0, 0, 1, 0], [], []>} : vector<5x32xbf16>, vector<14x32xbf16>, vector<5x14xf32> -> vector<5x14xf32>
    %cst_60 = arith.constant 1.000000e+00 : f32
    %105 = vector.broadcast %cst_60 : f32 to vector<1x14xf32>
    %106 = arith.subf %97, %105 : vector<1x14xf32>
    %cst_61 = arith.constant 1.000000e+09 : f32
    %107 = vector.broadcast %cst_61 : f32 to vector<1x14xf32>
    %108 = arith.mulf %106, %107 : vector<1x14xf32>
    %109 = vector.broadcast %108 : vector<1x14xf32> to vector<5x14xf32>
    %110 = arith.addf %104, %109 : vector<5x14xf32>
    %cst_62 = arith.constant dense<0xFF800000> : vector<5xf32>
    %111 = vector.multi_reduction <maximumf>, %110, %cst_62 [1] : vector<5x14xf32> to vector<5xf32>
    %112 = vector.shape_cast %111 : vector<5xf32> to vector<5x1xf32>
    %113 = vector.broadcast %112 : vector<5x1xf32> to vector<5x14xf32>
    %114 = arith.subf %110, %113 : vector<5x14xf32>
    %115 = math.exp %114 : vector<5x14xf32>
    %cst_63 = arith.constant dense<0.000000e+00> : vector<5xf32>
    %116 = vector.multi_reduction <add>, %115, %cst_63 [1] : vector<5x14xf32> to vector<5xf32>
    %117 = vector.shape_cast %116 : vector<5xf32> to vector<5x1xf32>
    %118 = tpu.reciprocal %117 {approx = true} : vector<5x1xf32> -> vector<5x1xf32>
    %119 = vector.broadcast %118 : vector<5x1xf32> to vector<5x14xf32>
    %120 = arith.mulf %115, %119 : vector<5x14xf32>
    %121 = arith.truncf %120 : vector<5x14xf32> to vector<5x14xbf16>
    %cst_64 = arith.constant dense<0.000000e+00> : vector<5x32xf32>
    %122 = tpu.matmul %121, %103, %cst_64 {dimension_numbers = #tpu.dot_dimension_numbers<[1], [0], [0], [1], [0, 0, 1, 1], [], []>} : vector<5x14xbf16>, vector<14x32xbf16>, vector<5x32xf32> -> vector<5x32xf32>
    %123 = arith.truncf %122 : vector<5x32xf32> to vector<5x32xbf16>
    %cst_65 = arith.constant dense<0.000000e+00> : vector<5x32xf32>
    %124 = tpu.matmul %123, %6, %cst_65 {dimension_numbers = #tpu.dot_dimension_numbers<[1], [0], [0], [1], [0, 0, 1, 1], [], []>} : vector<5x32xbf16>, vector<32x32xbf16>, vector<5x32xf32> -> vector<5x32xf32>
    %125 = arith.truncf %124 : vector<5x32xf32> to vector<5x32xbf16>
    %cst_66 = arith.constant dense<0.000000e+00> : vector<5x64xf32>
    %126 = tpu.matmul %125, %7, %cst_66 {dimension_numbers = #tpu.dot_dimension_numbers<[1], [1], [0], [0], [0, 0, 1, 0], [], []>} : vector<5x32xbf16>, vector<64x32xbf16>, vector<5x64xf32> -> vector<5x64xf32>
    %c1_67 = arith.constant 1 : index
    %c0_68 = arith.constant 0 : index
    %c0_69 = arith.constant 0 : index
    %127 = vector.load %arg11[%c1_67, %c0_68, %c0_69] : memref<2x5x64xf32, #tpu.memory_space<vmem>>, vector<1x5x64xf32>
    %128 = vector.shape_cast %127 : vector<1x5x64xf32> to vector<5x64xf32>
    %129 = vector.shape_cast %126 : vector<5x64xf32> to vector<1x5x64xf32>
    tpu.vector_store %arg11[%c1_67, %c0_68, %c0_69], %129 {strides = array<i32>} : memref<2x5x64xf32, #tpu.memory_space<vmem>>, vector<1x5x64xf32>,
    %c1_70 = arith.constant 1 : index
    %c0_71 = arith.constant 0 : index
    %c0_72 = arith.constant 0 : index
    %130 = vector.load %arg3[%c1_70, %c0_71, %c0_72] : memref<2x5x1xi32, #tpu.memory_space<vmem>>, vector<1x5x1xi32>
    %131 = vector.shape_cast %130 : vector<1x5x1xi32> to vector<5x1xi32>
    %cst_73 = arith.constant dense<0xFF800000> : vector<5xf32>
    %132 = vector.multi_reduction <maximumf>, %126, %cst_73 [1] : vector<5x64xf32> to vector<5xf32>
    %133 = vector.shape_cast %132 : vector<5xf32> to vector<5x1xf32>
    %134 = vector.broadcast %133 : vector<5x1xf32> to vector<5x64xf32>
    %135 = arith.subf %126, %134 : vector<5x64xf32>
    %136 = math.exp %135 : vector<5x64xf32>
    %cst_74 = arith.constant dense<0.000000e+00> : vector<5xf32>
    %137 = vector.multi_reduction <add>, %136, %cst_74 [1] : vector<5x64xf32> to vector<5xf32>
    %138 = vector.shape_cast %137 : vector<5xf32> to vector<5x1xf32>
    %139 = math.log %138 : vector<5x1xf32>
    %140 = vector.broadcast %131 : vector<5x1xi32> to vector<5x64xi32>
    %141 = arith.cmpi eq, %8, %140 : vector<5x64xi32>
    %142 = vector.broadcast %139 : vector<5x1xf32> to vector<5x64xf32>
    %143 = arith.subf %135, %142 : vector<5x64xf32>
    %cst_75 = arith.constant 0.000000e+00 : f32
    %144 = vector.broadcast %cst_75 : f32 to vector<5x64xf32>
    %145 = arith.select %141, %143, %144 : vector<5x64xi1>, vector<5x64xf32>
    %cst_76 = arith.constant dense<0.000000e+00> : vector<5xf32>
    %146 = vector.multi_reduction <add>, %145, %cst_76 [1] : vector<5x64xf32> to vector<5xf32>
    %147 = vector.shape_cast %146 : vector<5xf32> to vector<5x1xf32>
    %c-100_i32_77 = arith.constant -100 : i32
    %148 = vector.broadcast %c-100_i32_77 : i32 to vector<5x1xi32>
    %149 = arith.cmpi ne, %131, %148 : vector<5x1xi32>
    %150 = arith.extui %149 : vector<5x1xi1> to vector<5x1xi32>
    %151 = arith.sitofp %150 : vector<5x1xi32> to vector<5x1xf32>
    %152 = arith.mulf %151, %147 : vector<5x1xf32>
    %153 = vector.shape_cast %152 : vector<5x1xf32> to vector<1x5x1xf32>
    %cst_78 = arith.constant dense<0.000000e+00> : vector<1xf32>
    %154 = vector.multi_reduction <add>, %153, %cst_78 [1, 2] : vector<1x5x1xf32> to vector<1xf32>
    %155 = vector.shape_cast %154 : vector<1xf32> to vector<1x1x1xf32>
    %156 = vector.extract %155[0, 0, 0] : f32 from vector<1x1x1xf32>
    %157 = vector.broadcast %156 : f32 to vector<1x1xf32>
    %158 = arith.subf %81, %157 : vector<1x1xf32>
    %159 = vector.shape_cast %151 : vector<5x1xf32> to vector<1x5x1xf32>
    %cst_79 = arith.constant dense<0.000000e+00> : vector<1xf32>
    %160 = vector.multi_reduction <add>, %159, %cst_79 [1, 2] : vector<1x5x1xf32> to vector<1xf32>
    %161 = vector.shape_cast %160 : vector<1xf32> to vector<1x1x1xf32>
    %162 = vector.extract %161[0, 0, 0] : f32 from vector<1x1x1xf32>
    %163 = vector.broadcast %162 : f32 to vector<1x1xf32>
    %164 = arith.addf %87, %163 : vector<1x1xf32>
    %cst_80 = arith.constant 1.000000e+00 : f32
    %165 = vector.broadcast %cst_80 : f32 to vector<1x1xf32>
    %166 = arith.maximumf %164, %165 : vector<1x1xf32>
    %167 = arith.divf %158, %166 : vector<1x1xf32>
    %c0_81 = arith.constant 0 : index
    %c0_82 = arith.constant 0 : index
    %168 = vector.load %arg12[%c0_81, %c0_82] : memref<1x1xf32, #tpu.memory_space<vmem>>, vector<1x1xf32>
    tpu.vector_store %arg12[%c0_81, %c0_82], %167 {strides = array<i32>} : memref<1x1xf32, #tpu.memory_space<vmem>>, vector<1x1xf32>,
    return
  }
}

</mosaic_0001>

<llo_original>
// kernel: blip2_forward.4
$region0: #{blip2_forward.4}
  #allocation0 [shape = 'u32[]', space=smem, size = 0x4, offset = 0x4, fixed_abs, tag = 'smem constant byte address 0x4 - core index']
  #allocation1 [shape = 'u32[72,128]{1,0:T(1,128)}', space=vmem, size = 0x9000, scoped, tag = 'internal scratch']
  %s0 = inlined_call_operand.vmem [shape: f32[8,32], index: 0, kind: input, shape index: {}]
  %s1 = inlined_call_operand.vmem [shape: f32[2,5,48], index: 1, kind: input, shape index: {}]
  %s2 = inlined_call_operand.vmem [shape: f32[32,32], index: 2, kind: input, shape index: {}]
  %s3 = inlined_call_operand.vmem [shape: f32[48,32], index: 3, kind: input, shape index: {}]
  %s4 = inlined_call_operand.vmem [shape: f32[48,32], index: 4, kind: input, shape index: {}]
  %s5 = inlined_call_operand.vmem [shape: f32[32,32], index: 5, kind: input, shape index: {}]
  %s6 = inlined_call_operand.vmem [shape: f32[32,32], index: 6, kind: input, shape index: {}]
  %s7 = inlined_call_operand.vmem [shape: f32[1,32], index: 7, kind: input, shape index: {}]
  %s8 = inlined_call_operand.vmem [shape: bf16[2,8,32], index: 8, kind: output, shape index: {}]
  %s9 = sld [smem:[#allocation0]]
  $region42: #{blip2_forward.4} parent=0
    _
  %s11 = ssub.s32 1, %s9
  %s12 = scalar_select 0, %s11, %s9
  // Predicated region
  $region2: #{blip2_forward.4} parent=0 // pred_check
    _
  $region3: #{blip2_forward.4} parent=0 // pred_check_branch
    %14 = sbr.rel (0) target = $region5
  $region4: #{blip2_forward.4} parent=0 // pred_region
    _
  $region5: #{blip2_forward.4} parent=0 // pred_fallthru
    _
  // Predicated region
  $region6: #{blip2_forward.4} parent=0 // pred_check
    _
  $region7: #{blip2_forward.4} parent=0 // pred_check_branch
    %16 = sbr.rel (0) target = $region9
  $region8: #{blip2_forward.4} parent=0 // pred_region
    _
  $region9: #{blip2_forward.4} parent=0 // pred_fallthru
    _
  // Predicated region
  $region10: #{blip2_forward.4} parent=0 // pred_check
    _
  $region11: #{blip2_forward.4} parent=0 // pred_check_branch
    %18 = sbr.rel (0) target = $region13
  $region12: #{blip2_forward.4} parent=0 // pred_region
    _
  $region13: #{blip2_forward.4} parent=0 // pred_fallthru
    _
  // Predicated region
  $region14: #{blip2_forward.4} parent=0 // pred_check
    _
  $region15: #{blip2_forward.4} parent=0 // pred_check_branch
    %20 = sbr.rel (0) target = $region17
  $region16: #{blip2_forward.4} parent=0 // pred_region
    _
  $region17: #{blip2_forward.4} parent=0 // pred_fallthru
    _
  // Predicated region
  $region18: #{blip2_forward.4} parent=0 // pred_check
    _
  $region19: #{blip2_forward.4} parent=0 // pred_check_branch
    %22 = sbr.rel (0) target = $region21
  $region20: #{blip2_forward.4} parent=0 // pred_region
    _
  $region21: #{blip2_forward.4} parent=0 // pred_fallthru
    _
  // Predicated region
  $region22: #{blip2_forward.4} parent=0 // pred_check
    _
  $region23: #{blip2_forward.4} parent=0 // pred_check_branch
    %24 = sbr.rel (0) target = $region25
  $region24: #{blip2_forward.4} parent=0 // pred_region
    _
  $region25: #{blip2_forward.4} parent=0 // pred_fallthru
    _
  // Predicated region
  $region26: #{blip2_forward.4} parent=0 // pred_check
    _
  $region27: #{blip2_forward.4} parent=0 // pred_check_branch
    %26 = sbr.rel (0) target = $region29
  $region28: #{blip2_forward.4} parent=0 // pred_region
    _
  $region29: #{blip2_forward.4} parent=0 // pred_fallthru
    _
  // Predicated region
  $region30: #{blip2_forward.4} parent=0 // pred_check
    _
  $region31: #{blip2_forward.4} parent=0 // pred_check_branch
    %28 = sbr.rel (0) target = $region33
  $region32: #{blip2_forward.4} parent=0 // pred_region
    _
  $region33: #{blip2_forward.4} parent=0 // pred_fallthru
    _
  %v29 = vld [vmem:[%s3] sm:$0xff]
  %v30 = vld [vmem:[%s3 + $0x8] sm:$0xff]
  %v31 = vld [vmem:[%s3 + $0x10] sm:$0xff]
  %v32 = vld [vmem:[%s3 + $0x18] sm:$0xff]
  %v33 = vld [vmem:[%s3 + $0x20] sm:$0xff]
  %v34 = vld [vmem:[%s3 + $0x28] sm:$0xff]
  %v35 = vld [vmem:[%s4] sm:$0xff]
  %v36 = vld [vmem:[%s4 + $0x8] sm:$0xff]
  %v37 = vld [vmem:[%s4 + $0x10] sm:$0xff]
  %v38 = vld [vmem:[%s4 + $0x18] sm:$0xff]
  %v39 = vld [vmem:[%s4 + $0x20] sm:$0xff]
  %v40 = vld [vmem:[%s4 + $0x28] sm:$0xff]
  %v41 = vld [vmem:[%s5] sm:$0xff]
  %v42 = vld [vmem:[%s5 + $0x8] sm:$0xff]
  %v43 = vld [vmem:[%s5 + $0x10] sm:$0xff]
  %v44 = vld [vmem:[%s5 + $0x18] sm:$0xff]
  %v45 = vld [vmem:[%s6] sm:$0xff]
  %v46 = vld [vmem:[%s6 + $0x8] sm:$0xff]
  %v47 = vld [vmem:[%s6 + $0x10] sm:$0xff]
  %v48 = vld [vmem:[%s6 + $0x18] sm:$0xff]
  %v49 = vld [vmem:[%s7] sm:$0x1]
  %v50 = vld [vmem:[%s0] sm:$0xff]
  %v51 = vld [vmem:[%s2] sm:$0xff]
  %v52 = vld [vmem:[%s2 + $0x8] sm:$0xff]
  %v53 = vld [vmem:[%s2 + $0x10] sm:$0xff]
  %v54 = vld [vmem:[%s2 + $0x18] sm:$0xff]
  %vm55 = vcmask 261120
  %v57 = vsel %vm55, %v50, 0
  %59 = vmatpush.msra.mxu0 0.0
  %60 = vmatpush.msra.mxu0 0.0
  %61 = vmatpush.msra.mxu0 0.0
  %62 = vmatpush.msra.mxu0 0.0
  %63 = vmatpush.msra.mxu0 0.0
  %64 = vmatpush.msra.mxu0 0.0
  %65 = vmatpush.msra.mxu0 0.0
  %66 = vmatpush.msra.mxu0 0.0
  %67 = vmatpush.msra.mxu0 0.0
  %68 = vmatpush.msra.mxu0 0.0
  %69 = vmatpush.msra.mxu0 0.0
  %70 = vmatpush.msra.mxu0 0.0
  %71 = vmatpush.msra.mxu0 %v54
  %72 = vmatpush.msra.mxu0 %v53
  %73 = vmatpush.msra.mxu0 %v52
  %74 = vmatpush.msra.mxu0 %v51
  %75 = vmatmul.f32.gmra.mxu0 %v57
  %v76 = vpop.f32.mrf.mxu0
  %v77 = vadd.f32 0.0, %v76
  %78 = vdwg.mxu0
  %v79 = vld [vmem:[%s1] sm:$0x1f]
  %vm80 = vcmask 392192
  %v82 = vsel %vm80, %v79, 0
  %84 = vmatpush.msra.mxu0 0.0
  %85 = vmatpush.msra.mxu0 0.0
  %86 = vmatpush.msra.mxu0 0.0
  %87 = vmatpush.msra.mxu0 0.0
  %88 = vmatpush.msra.mxu0 0.0
  %89 = vmatpush.msra.mxu0 0.0
  %90 = vmatpush.msra.mxu0 0.0
  %91 = vmatpush.msra.mxu0 0.0
  %92 = vmatpush.msra.mxu0 0.0
  %93 = vmatpush.msra.mxu0 0.0
  %94 = vmatpush.msra.mxu0 %v34
  %95 = vmatpush.msra.mxu0 %v33
  %96 = vmatpush.msra.mxu0 %v32
  %97 = vmatpush.msra.mxu0 %v31
  %98 = vmatpush.msra.mxu0 %v30
  %99 = vmatpush.msra.mxu0 %v29
  %100 = vmatmul.f32.gmra.mxu0 %v82
  %v101 = vpop.f32.mrf.mxu0
  %v102 = vadd.f32 0.0, %v101
  %103 = vdwg.mxu0
  %104 = vmatpush.msra.mxu0 0.0
  %105 = vmatpush.msra.mxu0 0.0
  %106 = vmatpush.msra.mxu0 0.0
  %107 = vmatpush.msra.mxu0 0.0
  %108 = vmatpush.msra.mxu0 0.0
  %109 = vmatpush.msra.mxu0 0.0
  %110 = vmatpush.msra.mxu0 0.0
  %111 = vmatpush.msra.mxu0 0.0
  %112 = vmatpush.msra.mxu0 0.0
  %113 = vmatpush.msra.mxu0 0.0
  %114 = vmatpush.msra.mxu0 %v40
  %115 = vmatpush.msra.mxu0 %v39
  %116 = vmatpush.msra.mxu0 %v38
  %117 = vmatpush.msra.mxu0 %v37
  %118 = vmatpush.msra.mxu0 %v36
  %119 = vmatpush.msra.mxu0 %v35
  %120 = vmatmul.f32.gmra.mxu0 %v82
  %v121 = vpop.f32.mrf.mxu0
  %v122 = vadd.f32 0.0, %v121
  %123 = vdwg.mxu0
  %v125 = vsel %vm55, %v77, 0
  %v128 = vsel %vm55, %v102, 0
  %130 = vmatpush.xpose.msra.mxu0 0.0
  %131 = vmatpush.xpose.msra.mxu0 0.0
  %132 = vmatpush.xpose.msra.mxu0 0.0
  %133 = vmatpush.xpose.msra.mxu0 0.0
  %134 = vmatpush.xpose.msra.mxu0 0.0
  %135 = vmatpush.xpose.msra.mxu0 0.0
  %136 = vmatpush.xpose.msra.mxu0 0.0
  %137 = vmatpush.xpose.msra.mxu0 0.0
  %138 = vmatpush.xpose.msra.mxu0 0.0
  %139 = vmatpush.xpose.msra.mxu0 0.0
  %140 = vmatpush.xpose.msra.mxu0 0.0
  %141 = vmatpush.xpose.msra.mxu0 0.0
  %142 = vmatpush.xpose.msra.mxu0 0.0
  %143 = vmatpush.xpose.msra.mxu0 0.0
  %144 = vmatpush.xpose.msra.mxu0 0.0
  %145 = vmatpush.xpose.msra.mxu0 %v128
  %146 = vmatmul.f32.gmra.mxu0 %v125
  %v147 = vpop.f32.mrf.mxu0
  %v148 = vadd.f32 0.0, %v147
  %149 = vdwg.mxu0
  %vm150 = vcmask 39936
  %v151 = vsel %vm150, %v148, -inf
  %152 = vmax.xlane.f32.xlu0 %v151
  %v153 = vpop.xlane.xlu0 %152
  %v154 = vsub.f32 %v148, %v153
  %v155 = vmul.f32 %v154, 1.442695
  %v156 = vpow.pop %v155
  %v157 = vsel %vm150, %v156, 0.0
  %158 = vadd.xlane.f32.xlu0 %v157
  %v159 = vpop.xlane.xlu0 %158
  %v160 = vrcp.pop %v159
  %v161 = vmul.f32 %v156, %v160
  %v163 = vsel %vm150, %v161, 0
  %vm165 = vcmask 1044480
  %v167 = vsel %vm165, %v122, 0
  %169 = vmatpush.msra.mxu0 0.0
  %170 = vmatpush.msra.mxu0 0.0
  %171 = vmatpush.msra.mxu0 0.0
  %172 = vmatpush.msra.mxu0 0.0
  %173 = vmatpush.msra.mxu0 0.0
  %174 = vmatpush.msra.mxu0 0.0
  %175 = vmatpush.msra.mxu0 0.0
  %176 = vmatpush.msra.mxu0 0.0
  %177 = vmatpush.msra.mxu0 0.0
  %178 = vmatpush.msra.mxu0 0.0
  %179 = vmatpush.msra.mxu0 0.0
  %180 = vmatpush.msra.mxu0 0.0
  %181 = vmatpush.msra.mxu0 0.0
  %182 = vmatpush.msra.mxu0 0.0
  %183 = vmatpush.msra.mxu0 0.0
  %184 = vmatpush.msra.mxu0 %v167
  %185 = vmatmul.f32.gmra.mxu0 %v163
  %v186 = vpop.f32.mrf.mxu0
  %v187 = vadd.f32 0.0, %v186
  %188 = vdwg.mxu0
  %v190 = vsel %vm55, %v187, 0
  %192 = vmatpush.msra.mxu0 0.0
  %193 = vmatpush.msra.mxu0 0.0
  %194 = vmatpush.msra.mxu0 0.0
  %195 = vmatpush.msra.mxu0 0.0
  %196 = vmatpush.msra.mxu0 0.0
  %197 = vmatpush.msra.mxu0 0.0
  %198 = vmatpush.msra.mxu0 0.0
  %199 = vmatpush.msra.mxu0 0.0
  %200 = vmatpush.msra.mxu0 0.0
  %201 = vmatpush.msra.mxu0 0.0
  %202 = vmatpush.msra.mxu0 0.0
  %203 = vmatpush.msra.mxu0 0.0
  %204 = vmatpush.msra.mxu0 %v44
  %205 = vmatpush.msra.mxu0 %v43
  %206 = vmatpush.msra.mxu0 %v42
  %207 = vmatpush.msra.mxu0 %v41
  %208 = vmatmul.f32.gmra.mxu0 %v190
  %v209 = vpop.f32.mrf.mxu0
  %v210 = vadd.f32 0.0, %v209
  %211 = vdwg.mxu0
  %v213 = vperm.slane %v49, 0
  %v216 = vsel %vm55, %v210, 0
  %218 = vmatpush.msra.mxu0 0.0
  %219 = vmatpush.msra.mxu0 0.0
  %220 = vmatpush.msra.mxu0 0.0
  %221 = vmatpush.msra.mxu0 0.0
  %222 = vmatpush.msra.mxu0 0.0
  %223 = vmatpush.msra.mxu0 0.0
  %224 = vmatpush.msra.mxu0 0.0
  %225 = vmatpush.msra.mxu0 0.0
  %226 = vmatpush.msra.mxu0 0.0
  %227 = vmatpush.msra.mxu0 0.0
  %228 = vmatpush.msra.mxu0 0.0
  %229 = vmatpush.msra.mxu0 0.0
  %230 = vmatpush.msra.mxu0 %v48
  %231 = vmatpush.msra.mxu0 %v47
  %232 = vmatpush.msra.mxu0 %v46
  %233 = vmatpush.msra.mxu0 %v45
  %234 = vmatmul.f32.gmra.mxu0 %v216
  %v235 = vpop.f32.mrf.mxu0
  %v236 = vadd.f32 %v213, %v235
  %237 = vdwg.mxu0
  %v238 = vpack.c.bf16 %v236, %v236
  %vm239 = vcmask 257024
  %240 = vst.msk [vmem:[%s8] sm:$0xf] %vm239, %v238
  %s241 = scalar_lea.vmem %s1, 8
  %v242 = vld [vmem:[%s241] sm:$0x1f]
  %v244 = vsel %vm80, %v242, 0
  %246 = vmatpush.msra.mxu0 0.0
  %247 = vmatpush.msra.mxu0 0.0
  %248 = vmatpush.msra.mxu0 0.0
  %249 = vmatpush.msra.mxu0 0.0
  %250 = vmatpush.msra.mxu0 0.0
  %251 = vmatpush.msra.mxu0 0.0
  %252 = vmatpush.msra.mxu0 0.0
  %253 = vmatpush.msra.mxu0 0.0
  %254 = vmatpush.msra.mxu0 0.0
  %255 = vmatpush.msra.mxu0 0.0
  %256 = vmatpush.msra.mxu0 %v34
  %257 = vmatpush.msra.mxu0 %v33
  %258 = vmatpush.msra.mxu0 %v32
  %259 = vmatpush.msra.mxu0 %v31
  %260 = vmatpush.msra.mxu0 %v30
  %261 = vmatpush.msra.mxu0 %v29
  %262 = vmatmul.f32.gmra.mxu0 %v244
  %v263 = vpop.f32.mrf.mxu0
  %v264 = vadd.f32 0.0, %v263
  %265 = vdwg.mxu0
  %266 = vmatpush.msra.mxu0 0.0
  %267 = vmatpush.msra.mxu0 0.0
  %268 = vmatpush.msra.mxu0 0.0
  %269 = vmatpush.msra.mxu0 0.0
  %270 = vmatpush.msra.mxu0 0.0
  %271 = vmatpush.msra.mxu0 0.0
  %272 = vmatpush.msra.mxu0 0.0
  %273 = vmatpush.msra.mxu0 0.0
  %274 = vmatpush.msra.mxu0 0.0
  %275 = vmatpush.msra.mxu0 0.0
  %276 = vmatpush.msra.mxu0 %v40
  %277 = vmatpush.msra.mxu0 %v39
  %278 = vmatpush.msra.mxu0 %v38
  %279 = vmatpush.msra.mxu0 %v37
  %280 = vmatpush.msra.mxu0 %v36
  %281 = vmatpush.msra.mxu0 %v35
  %282 = vmatmul.f32.gmra.mxu0 %v244
  %v283 = vpop.f32.mrf.mxu0
  %v284 = vadd.f32 0.0, %v283
  %285 = vdwg.mxu0
  %v287 = vsel %vm55, %v264, 0
  %289 = vmatpush.xpose.msra.mxu0 0.0
  %290 = vmatpush.xpose.msra.mxu0 0.0
  %291 = vmatpush.xpose.msra.mxu0 0.0
  %292 = vmatpush.xpose.msra.mxu0 0.0
  %293 = vmatpush.xpose.msra.mxu0 0.0
  %294 = vmatpush.xpose.msra.mxu0 0.0
  %295 = vmatpush.xpose.msra.mxu0 0.0
  %296 = vmatpush.xpose.msra.mxu0 0.0
  %297 = vmatpush.xpose.msra.mxu0 0.0
  %298 = vmatpush.xpose.msra.mxu0 0.0
  %299 = vmatpush.xpose.msra.mxu0 0.0
  %300 = vmatpush.xpose.msra.mxu0 0.0
  %301 = vmatpush.xpose.msra.mxu0 0.0
  %302 = vmatpush.xpose.msra.mxu0 0.0
  %303 = vmatpush.xpose.msra.mxu0 0.0
  %304 = vmatpush.xpose.msra.mxu0 %v287
  %305 = vmatmul.f32.gmra.mxu0 %v125
  %v306 = vpop.f32.mrf.mxu0
  %v307 = vadd.f32 0.0, %v306
  %308 = vdwg.mxu0
  %v309 = vsel %vm150, %v307, -inf
  %310 = vmax.xlane.f32.xlu0 %v309
  %v311 = vpop.xlane.xlu0 %310
  %v312 = vsub.f32 %v307, %v311
  %v313 = vmul.f32 %v312, 1.442695
  %v314 = vpow.pop %v313
  %v315 = vsel %vm150, %v314, 0.0
  %316 = vadd.xlane.f32.xlu0 %v315
  %v317 = vpop.xlane.xlu0 %316
  %v318 = vrcp.pop %v317
  %v319 = vmul.f32 %v314, %v318
  %v321 = vsel %vm150, %v319, 0
  %v324 = vsel %vm165, %v284, 0
  %326 = vmatpush.msra.mxu0 0.0
  %327 = vmatpush.msra.mxu0 0.0
  %328 = vmatpush.msra.mxu0 0.0
  %329 = vmatpush.msra.mxu0 0.0
  %330 = vmatpush.msra.mxu0 0.0
  %331 = vmatpush.msra.mxu0 0.0
  %332 = vmatpush.msra.mxu0 0.0
  %333 = vmatpush.msra.mxu0 0.0
  %334 = vmatpush.msra.mxu0 0.0
  %335 = vmatpush.msra.mxu0 0.0
  %336 = vmatpush.msra.mxu0 0.0
  %337 = vmatpush.msra.mxu0 0.0
  %338 = vmatpush.msra.mxu0 0.0
  %339 = vmatpush.msra.mxu0 0.0
  %340 = vmatpush.msra.mxu0 0.0
  %341 = vmatpush.msra.mxu0 %v324
  %342 = vmatmul.f32.gmra.mxu0 %v321
  %v343 = vpop.f32.mrf.mxu0
  %v344 = vadd.f32 0.0, %v343
  %345 = vdwg.mxu0
  %v347 = vsel %vm55, %v344, 0
  %349 = vmatpush.msra.mxu0 0.0
  %350 = vmatpush.msra.mxu0 0.0
  %351 = vmatpush.msra.mxu0 0.0
  %352 = vmatpush.msra.mxu0 0.0
  %353 = vmatpush.msra.mxu0 0.0
  %354 = vmatpush.msra.mxu0 0.0
  %355 = vmatpush.msra.mxu0 0.0
  %356 = vmatpush.msra.mxu0 0.0
  %357 = vmatpush.msra.mxu0 0.0
  %358 = vmatpush.msra.mxu0 0.0
  %359 = vmatpush.msra.mxu0 0.0
  %360 = vmatpush.msra.mxu0 0.0
  %361 = vmatpush.msra.mxu0 %v44
  %362 = vmatpush.msra.mxu0 %v43
  %363 = vmatpush.msra.mxu0 %v42
  %364 = vmatpush.msra.mxu0 %v41
  %365 = vmatmul.f32.gmra.mxu0 %v347
  %v366 = vpop.f32.mrf.mxu0
  %v367 = vadd.f32 0.0, %v366
  %368 = vdwg.mxu0
  %v370 = vsel %vm55, %v367, 0
  %372 = vmatpush.msra.mxu0 0.0
  %373 = vmatpush.msra.mxu0 0.0
  %374 = vmatpush.msra.mxu0 0.0
  %375 = vmatpush.msra.mxu0 0.0
  %376 = vmatpush.msra.mxu0 0.0
  %377 = vmatpush.msra.mxu0 0.0
  %378 = vmatpush.msra.mxu0 0.0
  %379 = vmatpush.msra.mxu0 0.0
  %380 = vmatpush.msra.mxu0 0.0
  %381 = vmatpush.msra.mxu0 0.0
  %382 = vmatpush.msra.mxu0 0.0
  %383 = vmatpush.msra.mxu0 0.0
  %384 = vmatpush.msra.mxu0 %v48
  %385 = vmatpush.msra.mxu0 %v47
  %386 = vmatpush.msra.mxu0 %v46
  %387 = vmatpush.msra.mxu0 %v45
  %388 = vmatmul.f32.gmra.mxu0 %v370
  %v389 = vpop.f32.mrf.mxu0
  %v390 = vadd.f32 %v213, %v389
  %391 = vdwg.mxu0
  %v392 = vpack.c.bf16 %v390, %v390
  %s393 = scalar_lea.vmem %s8, 4
  %394 = vst.msk [vmem:[%s393] sm:$0xf] %vm239, %v392
  // Predicated region
  $region34: #{blip2_forward.4} parent=0 // pred_check
    _
  $region35: #{blip2_forward.4} parent=0 // pred_check_branch
    %396 = sbr.rel (0) target = $region37
  $region36: #{blip2_forward.4} parent=0 // pred_region
    _
  $region37: #{blip2_forward.4} parent=0 // pred_fallthru
    _
  // Predicated region
  $region38: #{blip2_forward.4} parent=0 // pred_check
    _
  $region39: #{blip2_forward.4} parent=0 // pred_check_branch
    %398 = sbr.rel (0) target = $region41
  $region40: #{blip2_forward.4} parent=0 // pred_region
    _
  $region41: #{blip2_forward.4} parent=0 // pred_fallthru
    _

// kernel: blip2_forward.3
$region0: #{blip2_forward.3}
  #allocation0 [shape = 'u32[]', space=smem, size = 0x4, offset = 0x4, fixed_abs, tag = 'smem constant byte address 0x4 - core index']
  #allocation1 [shape = 'u32[72,128]{1,0:T(1,128)}', space=vmem, size = 0x9000, scoped, tag = 'internal scratch']
  %s0 = inlined_call_operand.vmem [shape: f32[2,5,768], index: 0, kind: input, shape index: {}]
  %s1 = inlined_call_operand.vmem [shape: f32[768,32], index: 1, kind: input, shape index: {}]
  %s2 = inlined_call_operand.vmem [shape: f32[1,32], index: 2, kind: input, shape index: {}]
  %s3 = inlined_call_operand.vmem [shape: f32[1,32], index: 3, kind: input, shape index: {}]
  %s4 = inlined_call_operand.vmem [shape: f32[5,32], index: 4, kind: input, shape index: {}]
  %s5 = inlined_call_operand.vmem [shape: f32[32,48], index: 5, kind: input, shape index: {}]
  %s6 = inlined_call_operand.vmem [shape: f32[1,48], index: 6, kind: input, shape index: {}]
  %s7 = inlined_call_operand.vmem [shape: f32[1,48], index: 7, kind: input, shape index: {}]
  %s8 = inlined_call_operand.vmem [shape: f32[1,48], index: 8, kind: input, shape index: {}]
  %s9 = inlined_call_operand.vmem [shape: f32[2,5,48], index: 9, kind: output, shape index: {}]
  %s10 = sld [smem:[#allocation0]]
  $region46: #{blip2_forward.3} parent=0
    _
  %s12 = ssub.s32 1, %s10
  %s13 = scalar_select 0, %s12, %s10
  // Predicated region
  $region2: #{blip2_forward.3} parent=0 // pred_check
    _
  $region3: #{blip2_forward.3} parent=0 // pred_check_branch
    %15 = sbr.rel (0) target = $region5
  $region4: #{blip2_forward.3} parent=0 // pred_region
    _
  $region5: #{blip2_forward.3} parent=0 // pred_fallthru
    _
  // Predicated region
  $region6: #{blip2_forward.3} parent=0 // pred_check
    _
  $region7: #{blip2_forward.3} parent=0 // pred_check_branch
    %17 = sbr.rel (0) target = $region9
  $region8: #{blip2_forward.3} parent=0 // pred_region
    _
  $region9: #{blip2_forward.3} parent=0 // pred_fallthru
    _
  // Predicated region
  $region10: #{blip2_forward.3} parent=0 // pred_check
    _
  $region11: #{blip2_forward.3} parent=0 // pred_check_branch
    %19 = sbr.rel (0) target = $region13
  $region12: #{blip2_forward.3} parent=0 // pred_region
    _
  $region13: #{blip2_forward.3} parent=0 // pred_fallthru
    _
  // Predicated region
  $region14: #{blip2_forward.3} parent=0 // pred_check
    _
  $region15: #{blip2_forward.3} parent=0 // pred_check_branch
    %21 = sbr.rel (0) target = $region17
  $region16: #{blip2_forward.3} parent=0 // pred_region
    _
  $region17: #{blip2_forward.3} parent=0 // pred_fallthru
    _
  // Predicated region
  $region18: #{blip2_forward.3} parent=0 // pred_check
    _
  $region19: #{blip2_forward.3} parent=0 // pred_check_branch
    %23 = sbr.rel (0) target = $region21
  $region20: #{blip2_forward.3} parent=0 // pred_region
    _
  $region21: #{blip2_forward.3} parent=0 // pred_fallthru
    _
  // Predicated region
  $region22: #{blip2_forward.3} parent=0 // pred_check
    _
  $region23: #{blip2_forward.3} parent=0 // pred_check_branch
    %25 = sbr.rel (0) target = $region25
  $region24: #{blip2_forward.3} parent=0 // pred_region
    _
  $region25: #{blip2_forward.3} parent=0 // pred_fallthru
    _
  // Predicated region
  $region26: #{blip2_forward.3} parent=0 // pred_check
    _
  $region27: #{blip2_forward.3} parent=0 // pred_check_branch
    %27 = sbr.rel (0) target = $region29
  $region28: #{blip2_forward.3} parent=0 // pred_region
    _
  $region29: #{blip2_forward.3} parent=0 // pred_fallthru
    _
  // Predicated region
  $region30: #{blip2_forward.3} parent=0 // pred_check
    _
  $region31: #{blip2_forward.3} parent=0 // pred_check_branch
    %29 = sbr.rel (0) target = $region33
  $region32: #{blip2_forward.3} parent=0 // pred_region
    _
  $region33: #{blip2_forward.3} parent=0 // pred_fallthru
    _
  // Predicated region
  $region34: #{blip2_forward.3} parent=0 // pred_check
    _
  $region35: #{blip2_forward.3} parent=0 // pred_check_branch
    %31 = sbr.rel (0) target = $region37
  $region36: #{blip2_forward.3} parent=0 // pred_region
    _
  $region37: #{blip2_forward.3} parent=0 // pred_fallthru
    _
  %v32 = vld [vmem:[%s1] sm:$0xff]
  %v33 = vld [vmem:[%s1 + $0x8] sm:$0xff]
  %v34 = vld [vmem:[%s1 + $0x10] sm:$0xff]
  %v35 = vld [vmem:[%s1 + $0x18] sm:$0xff]
  %v36 = vld [vmem:[%s1 + $0x20] sm:$0xff]
  %v37 = vld [vmem:[%s1 + $0x28] sm:$0xff]
  %v38 = vld [vmem:[%s1 + $0x30] sm:$0xff]
  %v39 = vld [vmem:[%s1 + $0x38] sm:$0xff]
  %v40 = vld [vmem:[%s1 + $0x40] sm:$0xff]
  %v41 = vld [vmem:[%s1 + $0x48] sm:$0xff]
  %v42 = vld [vmem:[%s1 + $0x50] sm:$0xff]
  %v43 = vld [vmem:[%s1 + $0x58] sm:$0xff]
  %v44 = vld [vmem:[%s1 + $0x60] sm:$0xff]
  %v45 = vld [vmem:[%s1 + $0x68] sm:$0xff]
  %v46 = vld [vmem:[%s1 + $0x70] sm:$0xff]
  %v47 = vld [vmem:[%s1 + $0x78] sm:$0xff]
  %v48 = vld [vmem:[%s1 + $0x80] sm:$0xff]
  %v49 = vld [vmem:[%s1 + $0x88] sm:$0xff]
  %v50 = vld [vmem:[%s1 + $0x90] sm:$0xff]
  %v51 = vld [vmem:[%s1 + $0x98] sm:$0xff]
  %v52 = vld [vmem:[%s1 + $0xa0] sm:$0xff]
  %v53 = vld [vmem:[%s1 + $0xa8] sm:$0xff]
  %v54 = vld [vmem:[%s1 + $0xb0] sm:$0xff]
  %v55 = vld [vmem:[%s1 + $0xb8] sm:$0xff]
  %v56 = vld [vmem:[%s1 + $0xc0] sm:$0xff]
  %v57 = vld [vmem:[%s1 + $0xc8] sm:$0xff]
  %v58 = vld [vmem:[%s1 + $0xd0] sm:$0xff]
  %v59 = vld [vmem:[%s1 + $0xd8] sm:$0xff]
  %v60 = vld [vmem:[%s1 + $0xe0] sm:$0xff]
  %v61 = vld [vmem:[%s1 + $0xe8] sm:$0xff]
  %v62 = vld [vmem:[%s1 + $0xf0] sm:$0xff]
  %v63 = vld [vmem:[%s1 + $0xf8] sm:$0xff]
  %v64 = vld [vmem:[%s1 + $0x100] sm:$0xff]
  %v65 = vld [vmem:[%s1 + $0x108] sm:$0xff]
  %v66 = vld [vmem:[%s1 + $0x110] sm:$0xff]
  %v67 = vld [vmem:[%s1 + $0x118] sm:$0xff]
  %v68 = vld [vmem:[%s1 + $0x120] sm:$0xff]
  %v69 = vld [vmem:[%s1 + $0x128] sm:$0xff]
  %v70 = vld [vmem:[%s1 + $0x130] sm:$0xff]
  %v71 = vld [vmem:[%s1 + $0x138] sm:$0xff]
  %v72 = vld [vmem:[%s1 + $0x140] sm:$0xff]
  %v73 = vld [vmem:[%s1 + $0x148] sm:$0xff]
  %v74 = vld [vmem:[%s1 + $0x150] sm:$0xff]
  %v75 = vld [vmem:[%s1 + $0x158] sm:$0xff]
  %v76 = vld [vmem:[%s1 + $0x160] sm:$0xff]
  %v77 = vld [vmem:[%s1 + $0x168] sm:$0xff]
  %v78 = vld [vmem:[%s1 + $0x170] sm:$0xff]
  %v79 = vld [vmem:[%s1 + $0x178] sm:$0xff]
  %v80 = vld [vmem:[%s1 + $0x180] sm:$0xff]
  %v81 = vld [vmem:[%s1 + $0x188] sm:$0xff]
  %v82 = vld [vmem:[%s1 + $0x190] sm:$0xff]
  %v83 = vld [vmem:[%s1 + $0x198] sm:$0xff]
  %v84 = vld [vmem:[%s1 + $0x1a0] sm:$0xff]
  %v85 = vld [vmem:[%s1 + $0x1a8] sm:$0xff]
  %v86 = vld [vmem:[%s1 + $0x1b0] sm:$0xff]
  %v87 = vld [vmem:[%s1 + $0x1b8] sm:$0xff]
  %v88 = vld [vmem:[%s1 + $0x1c0] sm:$0xff]
  %v89 = vld [vmem:[%s1 + $0x1c8] sm:$0xff]
  %v90 = vld [vmem:[%s1 + $0x1d0] sm:$0xff]
  %v91 = vld [vmem:[%s1 + $0x1d8] sm:$0xff]
  %v92 = vld [vmem:[%s1 + $0x1e0] sm:$0xff]
  %v93 = vld [vmem:[%s1 + $0x1e8] sm:$0xff]
  %v94 = vld [vmem:[%s1 + $0x1f0] sm:$0xff]
  %v95 = vld [vmem:[%s1 + $0x1f8] sm:$0xff]
  %v96 = vld [vmem:[%s1 + $0x200] sm:$0xff]
  %v97 = vld [vmem:[%s1 + $0x208] sm:$0xff]
  %v98 = vld [vmem:[%s1 + $0x210] sm:$0xff]
  %v99 = vld [vmem:[%s1 + $0x218] sm:$0xff]
  %v100 = vld [vmem:[%s1 + $0x220] sm:$0xff]
  %v101 = vld [vmem:[%s1 + $0x228] sm:$0xff]
  %v102 = vld [vmem:[%s1 + $0x230] sm:$0xff]
  %v103 = vld [vmem:[%s1 + $0x238] sm:$0xff]
  %v104 = vld [vmem:[%s1 + $0x240] sm:$0xff]
  %v105 = vld [vmem:[%s1 + $0x248] sm:$0xff]
  %v106 = vld [vmem:[%s1 + $0x250] sm:$0xff]
  %v107 = vld [vmem:[%s1 + $0x258] sm:$0xff]
  %v108 = vld [vmem:[%s1 + $0x260] sm:$0xff]
  %v109 = vld [vmem:[%s1 + $0x268] sm:$0xff]
  %v110 = vld [vmem:[%s1 + $0x270] sm:$0xff]
  %v111 = vld [vmem:[%s1 + $0x278] sm:$0xff]
  %v112 = vld [vmem:[%s1 + $0x280] sm:$0xff]
  %v113 = vld [vmem:[%s1 + $0x288] sm:$0xff]
  %v114 = vld [vmem:[%s1 + $0x290] sm:$0xff]
  %v115 = vld [vmem:[%s1 + $0x298] sm:$0xff]
  %v116 = vld [vmem:[%s1 + $0x2a0] sm:$0xff]
  %v117 = vld [vmem:[%s1 + $0x2a8] sm:$0xff]
  %v118 = vld [vmem:[%s1 + $0x2b0] sm:$0xff]
  %v119 = vld [vmem:[%s1 + $0x2b8] sm:$0xff]
  %v120 = vld [vmem:[%s1 + $0x2c0] sm:$0xff]
  %v121 = vld [vmem:[%s1 + $0x2c8] sm:$0xff]
  %v122 = vld [vmem:[%s1 + $0x2d0] sm:$0xff]
  %v123 = vld [vmem:[%s1 + $0x2d8] sm:$0xff]
  %v124 = vld [vmem:[%s1 + $0x2e0] sm:$0xff]
  %v125 = vld [vmem:[%s1 + $0x2e8] sm:$0xff]
  %v126 = vld [vmem:[%s1 + $0x2f0] sm:$0xff]
  %v127 = vld [vmem:[%s1 + $0x2f8] sm:$0xff]
  %v128 = vld [vmem:[%s2] sm:$0x1]
  %v129 = vld [vmem:[%s5] sm:$0xff]
  %v130 = vld [vmem:[%s5 + $0x8] sm:$0xff]
  %v131 = vld [vmem:[%s5 + $0x10] sm:$0xff]
  %v132 = vld [vmem:[%s5 + $0x18] sm:$0xff]
  %v133 = vld [vmem:[%s6] sm:$0x1]
  %v134 = vld [vmem:[%s7] sm:$0x1]
  %v135 = vld [vmem:[%s8] sm:$0x1]
  %v136 = vld [vmem:[%s4] sm:$0x1f]
  %v137 = vld [vmem:[%s3] sm:$0x1]
  %v139 = vperm.slane %v137, 0
  %v141 = vlaneseq
  %v142 = vshrl.u32 %v141, 7
  %v143 = vld [vmem:[%s0] sm:$0x1f]
  %v144 = vld [vmem:[%s0 + $0x8] sm:$0x1f]
  %v145 = vld [vmem:[%s0 + $0x10] sm:$0x1f]
  %v146 = vld [vmem:[%s0 + $0x18] sm:$0x1f]
  %v147 = vld [vmem:[%s0 + $0x20] sm:$0x1f]
  %v148 = vld [vmem:[%s0 + $0x28] sm:$0x1f]
  %v150 = vperm.slane %v128, 0
  %152 = vmatpush.msra.mxu0 %v47
  %153 = vmatpush.msra.mxu0 %v46
  %154 = vmatpush.msra.mxu0 %v45
  %155 = vmatpush.msra.mxu0 %v44
  %156 = vmatpush.msra.mxu0 %v43
  %157 = vmatpush.msra.mxu0 %v42
  %158 = vmatpush.msra.mxu0 %v41
  %159 = vmatpush.msra.mxu0 %v40
  %160 = vmatpush.msra.mxu0 %v39
  %161 = vmatpush.msra.mxu0 %v38
  %162 = vmatpush.msra.mxu0 %v37
  %163 = vmatpush.msra.mxu0 %v36
  %164 = vmatpush.msra.mxu0 %v35
  %165 = vmatpush.msra.mxu0 %v34
  %166 = vmatpush.msra.mxu0 %v33
  %167 = vmatpush.msra.mxu0 %v32
  %168 = vmatmul.f32.gmra.mxu0 %v143
  %v169 = vpop.f32.mrf.mxu0
  %v170 = vadd.f32 %v150, %v169
  %171 = vdwg.mxu0
  %172 = vmatpush.msra.mxu0 %v63
  %173 = vmatpush.msra.mxu0 %v62
  %174 = vmatpush.msra.mxu0 %v61
  %175 = vmatpush.msra.mxu0 %v60
  %176 = vmatpush.msra.mxu0 %v59
  %177 = vmatpush.msra.mxu0 %v58
  %178 = vmatpush.msra.mxu0 %v57
  %179 = vmatpush.msra.mxu0 %v56
  %180 = vmatpush.msra.mxu0 %v55
  %181 = vmatpush.msra.mxu0 %v54
  %182 = vmatpush.msra.mxu0 %v53
  %183 = vmatpush.msra.mxu0 %v52
  %184 = vmatpush.msra.mxu0 %v51
  %185 = vmatpush.msra.mxu0 %v50
  %186 = vmatpush.msra.mxu0 %v49
  %187 = vmatpush.msra.mxu0 %v48
  %188 = vmatmul.f32.gmra.mxu0 %v144
  %v189 = vpop.f32.mrf.mxu0
  %v190 = vadd.f32 %v170, %v189
  %191 = vdwg.mxu0
  %192 = vmatpush.msra.mxu0 %v79
  %193 = vmatpush.msra.mxu0 %v78
  %194 = vmatpush.msra.mxu0 %v77
  %195 = vmatpush.msra.mxu0 %v76
  %196 = vmatpush.msra.mxu0 %v75
  %197 = vmatpush.msra.mxu0 %v74
  %198 = vmatpush.msra.mxu0 %v73
  %199 = vmatpush.msra.mxu0 %v72
  %200 = vmatpush.msra.mxu0 %v71
  %201 = vmatpush.msra.mxu0 %v70
  %202 = vmatpush.msra.mxu0 %v69
  %203 = vmatpush.msra.mxu0 %v68
  %204 = vmatpush.msra.mxu0 %v67
  %205 = vmatpush.msra.mxu0 %v66
  %206 = vmatpush.msra.mxu0 %v65
  %207 = vmatpush.msra.mxu0 %v64
  %208 = vmatmul.f32.gmra.mxu0 %v145
  %v209 = vpop.f32.mrf.mxu0
  %v210 = vadd.f32 %v190, %v209
  %211 = vdwg.mxu0
  %212 = vmatpush.msra.mxu0 %v95
  %213 = vmatpush.msra.mxu0 %v94
  %214 = vmatpush.msra.mxu0 %v93
  %215 = vmatpush.msra.mxu0 %v92
  %216 = vmatpush.msra.mxu0 %v91
  %217 = vmatpush.msra.mxu0 %v90
  %218 = vmatpush.msra.mxu0 %v89
  %219 = vmatpush.msra.mxu0 %v88
  %220 = vmatpush.msra.mxu0 %v87
  %221 = vmatpush.msra.mxu0 %v86
  %222 = vmatpush.msra.mxu0 %v85
  %223 = vmatpush.msra.mxu0 %v84
  %224 = vmatpush.msra.mxu0 %v83
  %225 = vmatpush.msra.mxu0 %v82
  %226 = vmatpush.msra.mxu0 %v81
  %227 = vmatpush.msra.mxu0 %v80
  %228 = vmatmul.f32.gmra.mxu0 %v146
  %v229 = vpop.f32.mrf.mxu0
  %v230 = vadd.f32 %v210, %v229
  %231 = vdwg.mxu0
  %232 = vmatpush.msra.mxu0 %v111
  %233 = vmatpush.msra.mxu0 %v110
  %234 = vmatpush.msra.mxu0 %v109
  %235 = vmatpush.msra.mxu0 %v108
  %236 = vmatpush.msra.mxu0 %v107
  %237 = vmatpush.msra.mxu0 %v106
  %238 = vmatpush.msra.mxu0 %v105
  %239 = vmatpush.msra.mxu0 %v104
  %240 = vmatpush.msra.mxu0 %v103
  %241 = vmatpush.msra.mxu0 %v102
  %242 = vmatpush.msra.mxu0 %v101
  %243 = vmatpush.msra.mxu0 %v100
  %244 = vmatpush.msra.mxu0 %v99
  %245 = vmatpush.msra.mxu0 %v98
  %246 = vmatpush.msra.mxu0 %v97
  %247 = vmatpush.msra.mxu0 %v96
  %248 = vmatmul.f32.gmra.mxu0 %v147
  %v249 = vpop.f32.mrf.mxu0
  %v250 = vadd.f32 %v230, %v249
  %251 = vdwg.mxu0
  %252 = vmatpush.msra.mxu0 %v127
  %253 = vmatpush.msra.mxu0 %v126
  %254 = vmatpush.msra.mxu0 %v125
  %255 = vmatpush.msra.mxu0 %v124
  %256 = vmatpush.msra.mxu0 %v123
  %257 = vmatpush.msra.mxu0 %v122
  %258 = vmatpush.msra.mxu0 %v121
  %259 = vmatpush.msra.mxu0 %v120
  %260 = vmatpush.msra.mxu0 %v119
  %261 = vmatpush.msra.mxu0 %v118
  %262 = vmatpush.msra.mxu0 %v117
  %263 = vmatpush.msra.mxu0 %v116
  %264 = vmatpush.msra.mxu0 %v115
  %265 = vmatpush.msra.mxu0 %v114
  %266 = vmatpush.msra.mxu0 %v113
  %267 = vmatpush.msra.mxu0 %v112
  %268 = vmatmul.f32.gmra.mxu0 %v148
  %v269 = vpop.f32.mrf.mxu0
  %v270 = vadd.f32 %v250, %v269
  %271 = vdwg.mxu0
  %vm272 = vcmp.eq.s32.totalorder %v142, 0
  %v273 = vsel %vm272, %v139, %v270
  %v274 = vadd.f32 %v273, %v136
  %v276 = vperm.slane %v133, 0
  %vm278 = vcmask 261120
  %v280 = vsel %vm278, %v274, 0
  %282 = vmatpush.msra.mxu0 0.0
  %283 = vmatpush.msra.mxu0 0.0
  %284 = vmatpush.msra.mxu0 0.0
  %285 = vmatpush.msra.mxu0 0.0
  %286 = vmatpush.msra.mxu0 0.0
  %287 = vmatpush.msra.mxu0 0.0
  %288 = vmatpush.msra.mxu0 0.0
  %289 = vmatpush.msra.mxu0 0.0
  %290 = vmatpush.msra.mxu0 0.0
  %291 = vmatpush.msra.mxu0 0.0
  %292 = vmatpush.msra.mxu0 0.0
  %293 = vmatpush.msra.mxu0 0.0
  %294 = vmatpush.msra.mxu0 %v132
  %295 = vmatpush.msra.mxu0 %v131
  %296 = vmatpush.msra.mxu0 %v130
  %297 = vmatpush.msra.mxu0 %v129
  %298 = vmatmul.f32.gmra.mxu0 %v280
  %v299 = vpop.f32.mrf.mxu0
  %v300 = vadd.f32 %v276, %v299
  %301 = vdwg.mxu0
  %vm302 = vcmask 389120
  %v303 = vsel %vm302, %v300, 0.0
  %304 = vadd.xlane.f32.xlu0 %v303
  %v305 = vpop.xlane.xlu0 %304
  %v306 = vrcp.pop 48.0
  %v307 = vmul.f32 48.0, %v306
  %v308 = vsub.f32 1.0, %v307
  %v309 = vmul.f32 %v306, %v308
  %v310 = vadd.f32 %v306, %v309
  %vm311 = vweird.f32 %v306
  %v312 = vsel %vm311, %v306, %v310
  %v313 = vmul.f32 %v305, %v312
  %v314 = vsub.f32 %v300, %v313
  %v315 = vmul.f32 %v314, %v314
  %v316 = vsel %vm302, %v315, 0.0
  %317 = vadd.xlane.f32.xlu0 %v316
  %v318 = vpop.xlane.xlu0 %317
  %v319 = vmul.f32 %v318, %v312
  %v320 = vadd.f32 %v319, 1e-05
  %v321 = vrsqrt.pop %v320
  %v322 = vmul.f32 %v321, %v320
  %v323 = vmul.f32 %v322, %v321
  %v324 = vmul.f32 0.5, %v323
  %v325 = vsub.f32 1.5, %v324
  %v326 = vmul.f32 %v321, %v325
  %vm327 = vweird.f32 %v320
  %vm328 = vweird.f32 %v321
  %vm329 = vmor %vm327, %vm328
  %v330 = vsel %vm329, %v321, %v326
  %v331 = vmul.f32 %v314, %v330
  %v333 = vperm.slane %v134, 0
  %v335 = vmul.f32 %v331, %v333
  %v337 = vperm.slane %v135, 0
  %v339 = vadd.f32 %v335, %v337
  %340 = vst.msk [vmem:[%s9] sm:$0x1f] %vm302, %v339
  %s341 = scalar_lea.vmem %s0, 48
  %v342 = vld [vmem:[%s341] sm:$0x1f]
  %v343 = vld [vmem:[%s341 + $0x8] sm:$0x1f]
  %v344 = vld [vmem:[%s341 + $0x10] sm:$0x1f]
  %v345 = vld [vmem:[%s341 + $0x18] sm:$0x1f]
  %v346 = vld [vmem:[%s341 + $0x20] sm:$0x1f]
  %v347 = vld [vmem:[%s341 + $0x28] sm:$0x1f]
  %348 = vmatpush.msra.mxu0 %v47
  %349 = vmatpush.msra.mxu0 %v46
  %350 = vmatpush.msra.mxu0 %v45
  %351 = vmatpush.msra.mxu0 %v44
  %352 = vmatpush.msra.mxu0 %v43
  %353 = vmatpush.msra.mxu0 %v42
  %354 = vmatpush.msra.mxu0 %v41
  %355 = vmatpush.msra.mxu0 %v40
  %356 = vmatpush.msra.mxu0 %v39
  %357 = vmatpush.msra.mxu0 %v38
  %358 = vmatpush.msra.mxu0 %v37
  %359 = vmatpush.msra.mxu0 %v36
  %360 = vmatpush.msra.mxu0 %v35
  %361 = vmatpush.msra.mxu0 %v34
  %362 = vmatpush.msra.mxu0 %v33
  %363 = vmatpush.msra.mxu0 %v32
  %364 = vmatmul.f32.gmra.mxu0 %v342
  %v365 = vpop.f32.mrf.mxu0
  %v366 = vadd.f32 %v150, %v365
  %367 = vdwg.mxu0
  %368 = vmatpush.msra.mxu0 %v63
  %369 = vmatpush.msra.mxu0 %v62
  %370 = vmatpush.msra.mxu0 %v61
  %371 = vmatpush.msra.mxu0 %v60
  %372 = vmatpush.msra.mxu0 %v59
  %373 = vmatpush.msra.mxu0 %v58
  %374 = vmatpush.msra.mxu0 %v57
  %375 = vmatpush.msra.mxu0 %v56
  %376 = vmatpush.msra.mxu0 %v55
  %377 = vmatpush.msra.mxu0 %v54
  %378 = vmatpush.msra.mxu0 %v53
  %379 = vmatpush.msra.mxu0 %v52
  %380 = vmatpush.msra.mxu0 %v51
  %381 = vmatpush.msra.mxu0 %v50
  %382 = vmatpush.msra.mxu0 %v49
  %383 = vmatpush.msra.mxu0 %v48
  %384 = vmatmul.f32.gmra.mxu0 %v343
  %v385 = vpop.f32.mrf.mxu0
  %v386 = vadd.f32 %v366, %v385
  %387 = vdwg.mxu0
  %388 = vmatpush.msra.mxu0 %v79
  %389 = vmatpush.msra.mxu0 %v78
  %390 = vmatpush.msra.mxu0 %v77
  %391 = vmatpush.msra.mxu0 %v76
  %392 = vmatpush.msra.mxu0 %v75
  %393 = vmatpush.msra.mxu0 %v74
  %394 = vmatpush.msra.mxu0 %v73
  %395 = vmatpush.msra.mxu0 %v72
  %396 = vmatpush.msra.mxu0 %v71
  %397 = vmatpush.msra.mxu0 %v70
  %398 = vmatpush.msra.mxu0 %v69
  %399 = vmatpush.msra.mxu0 %v68
  %400 = vmatpush.msra.mxu0 %v67
  %401 = vmatpush.msra.mxu0 %v66
  %402 = vmatpush.msra.mxu0 %v65
  %403 = vmatpush.msra.mxu0 %v64
  %404 = vmatmul.f32.gmra.mxu0 %v344
  %v405 = vpop.f32.mrf.mxu0
  %v406 = vadd.f32 %v386, %v405
  %407 = vdwg.mxu0
  %408 = vmatpush.msra.mxu0 %v95
  %409 = vmatpush.msra.mxu0 %v94
  %410 = vmatpush.msra.mxu0 %v93
  %411 = vmatpush.msra.mxu0 %v92
  %412 = vmatpush.msra.mxu0 %v91
  %413 = vmatpush.msra.mxu0 %v90
  %414 = vmatpush.msra.mxu0 %v89
  %415 = vmatpush.msra.mxu0 %v88
  %416 = vmatpush.msra.mxu0 %v87
  %417 = vmatpush.msra.mxu0 %v86
  %418 = vmatpush.msra.mxu0 %v85
  %419 = vmatpush.msra.mxu0 %v84
  %420 = vmatpush.msra.mxu0 %v83
  %421 = vmatpush.msra.mxu0 %v82
  %422 = vmatpush.msra.mxu0 %v81
  %423 = vmatpush.msra.mxu0 %v80
  %424 = vmatmul.f32.gmra.mxu0 %v345
  %v425 = vpop.f32.mrf.mxu0
  %v426 = vadd.f32 %v406, %v425
  %427 = vdwg.mxu0
  %428 = vmatpush.msra.mxu0 %v111
  %429 = vmatpush.msra.mxu0 %v110
  %430 = vmatpush.msra.mxu0 %v109
  %431 = vmatpush.msra.mxu0 %v108
  %432 = vmatpush.msra.mxu0 %v107
  %433 = vmatpush.msra.mxu0 %v106
  %434 = vmatpush.msra.mxu0 %v105
  %435 = vmatpush.msra.mxu0 %v104
  %436 = vmatpush.msra.mxu0 %v103
  %437 = vmatpush.msra.mxu0 %v102
  %438 = vmatpush.msra.mxu0 %v101
  %439 = vmatpush.msra.mxu0 %v100
  %440 = vmatpush.msra.mxu0 %v99
  %441 = vmatpush.msra.mxu0 %v98
  %442 = vmatpush.msra.mxu0 %v97
  %443 = vmatpush.msra.mxu0 %v96
  %444 = vmatmul.f32.gmra.mxu0 %v346
  %v445 = vpop.f32.mrf.mxu0
  %v446 = vadd.f32 %v426, %v445
  %447 = vdwg.mxu0
  %448 = vmatpush.msra.mxu0 %v127
  %449 = vmatpush.msra.mxu0 %v126
  %450 = vmatpush.msra.mxu0 %v125
  %451 = vmatpush.msra.mxu0 %v124
  %452 = vmatpush.msra.mxu0 %v123
  %453 = vmatpush.msra.mxu0 %v122
  %454 = vmatpush.msra.mxu0 %v121
  %455 = vmatpush.msra.mxu0 %v120
  %456 = vmatpush.msra.mxu0 %v119
  %457 = vmatpush.msra.mxu0 %v118
  %458 = vmatpush.msra.mxu0 %v117
  %459 = vmatpush.msra.mxu0 %v116
  %460 = vmatpush.msra.mxu0 %v115
  %461 = vmatpush.msra.mxu0 %v114
  %462 = vmatpush.msra.mxu0 %v113
  %463 = vmatpush.msra.mxu0 %v112
  %464 = vmatmul.f32.gmra.mxu0 %v347
  %v465 = vpop.f32.mrf.mxu0
  %v466 = vadd.f32 %v446, %v465
  %467 = vdwg.mxu0
  %v468 = vsel %vm272, %v139, %v466
  %v469 = vadd.f32 %v468, %v136
  %v471 = vsel %vm278, %v469, 0
  %473 = vmatpush.msra.mxu0 0.0
  %474 = vmatpush.msra.mxu0 0.0
  %475 = vmatpush.msra.mxu0 0.0
  %476 = vmatpush.msra.mxu0 0.0
  %477 = vmatpush.msra.mxu0 0.0
  %478 = vmatpush.msra.mxu0 0.0
  %479 = vmatpush.msra.mxu0 0.0
  %480 = vmatpush.msra.mxu0 0.0
  %481 = vmatpush.msra.mxu0 0.0
  %482 = vmatpush.msra.mxu0 0.0
  %483 = vmatpush.msra.mxu0 0.0
  %484 = vmatpush.msra.mxu0 0.0
  %485 = vmatpush.msra.mxu0 %v132
  %486 = vmatpush.msra.mxu0 %v131
  %487 = vmatpush.msra.mxu0 %v130
  %488 = vmatpush.msra.mxu0 %v129
  %489 = vmatmul.f32.gmra.mxu0 %v471
  %v490 = vpop.f32.mrf.mxu0
  %v491 = vadd.f32 %v276, %v490
  %492 = vdwg.mxu0
  %v493 = vsel %vm302, %v491, 0.0
  %494 = vadd.xlane.f32.xlu0 %v493
  %v495 = vpop.xlane.xlu0 %494
  %v496 = vmul.f32 %v495, %v312
  %v497 = vsub.f32 %v491, %v496
  %v498 = vmul.f32 %v497, %v497
  %v499 = vsel %vm302, %v498, 0.0
  %500 = vadd.xlane.f32.xlu0 %v499
  %v501 = vpop.xlane.xlu0 %500
  %v502 = vmul.f32 %v501, %v312
  %v503 = vadd.f32 %v502, 1e-05
  %v504 = vrsqrt.pop %v503
  %v505 = vmul.f32 %v504, %v503
  %v506 = vmul.f32 %v505, %v504
  %v507 = vmul.f32 0.5, %v506
  %v508 = vsub.f32 1.5, %v507
  %v509 = vmul.f32 %v504, %v508
  %vm510 = vweird.f32 %v503
  %vm511 = vweird.f32 %v504
  %vm512 = vmor %vm510, %vm511
  %v513 = vsel %vm512, %v504, %v509
  %v514 = vmul.f32 %v497, %v513
  %v515 = vmul.f32 %v514, %v333
  %v516 = vadd.f32 %v515, %v337
  %s517 = scalar_lea.vmem %s9, 8
  %518 = vst.msk [vmem:[%s517] sm:$0x1f] %vm302, %v516
  // Predicated region
  $region38: #{blip2_forward.3} parent=0 // pred_check
    _
  $region39: #{blip2_forward.3} parent=0 // pred_check_branch
    %520 = sbr.rel (0) target = $region41
  $region40: #{blip2_forward.3} parent=0 // pred_region
    _
  $region41: #{blip2_forward.3} parent=0 // pred_fallthru
    _
  // Predicated region
  $region42: #{blip2_forward.3} parent=0 // pred_check
    _
  $region43: #{blip2_forward.3} parent=0 // pred_check_branch
    %522 = sbr.rel (0) target = $region45
  $region44: #{blip2_forward.3} parent=0 // pred_region
    _
  $region45: #{blip2_forward.3} parent=0 // pred_fallthru
    _

// kernel: blip2_forward.5
$region0: #{blip2_forward.5}
  #allocation0 [shape = 'u32[]', space=smem, size = 0x4, offset = 0x4, fixed_abs, tag = 'smem constant byte address 0x4 - core index']
  #allocation1 [shape = 'u32[72,128]{1,0:T(1,128)}', space=vmem, size = 0x9000, scoped, tag = 'internal scratch']
  %s0 = inlined_call_operand.vmem [shape: bf16[2,14,32], index: 0, kind: input, shape index: {}]
  %s1 = inlined_call_operand.vmem [shape: f32[2,1,14], index: 1, kind: input, shape index: {}]
  %s2 = inlined_call_operand.vmem [shape: bf16[2,5,32], index: 2, kind: input, shape index: {}]
  %s3 = inlined_call_operand.vmem [shape: s32[2,5,1], index: 3, kind: input, shape index: {}]
  %s4 = inlined_call_operand.vmem [shape: bf16[32,32], index: 4, kind: input, shape index: {}]
  %s5 = inlined_call_operand.vmem [shape: bf16[1,32], index: 5, kind: input, shape index: {}]
  %s6 = inlined_call_operand.vmem [shape: bf16[32,32], index: 6, kind: input, shape index: {}]
  %s7 = inlined_call_operand.vmem [shape: bf16[32,32], index: 7, kind: input, shape index: {}]
  %s8 = inlined_call_operand.vmem [shape: bf16[32,32], index: 8, kind: input, shape index: {}]
  %s9 = inlined_call_operand.vmem [shape: bf16[32,32], index: 9, kind: input, shape index: {}]
  %s10 = inlined_call_operand.vmem [shape: bf16[64,32], index: 10, kind: input, shape index: {}]
  %s11 = inlined_call_operand.vmem [shape: f32[2,5,64], index: 11, kind: output, shape index: {0}]
  %s12 = inlined_call_operand.hbm [shape: f32[1,1], index: 12, kind: output, shape index: {1}]
  %13 = xla_tuple %s11, %s12
  %s14 = sld [smem:[#allocation0]]
  $region62: #{blip2_forward.5} parent=0
    _
  %s16 = ssub.s32 1, %s14
  %s17 = scalar_select 0, %s16, %s14
  $region1: #{blip2_forward.5} parent=0
    #allocation2 [shape = 'u8[512]{0}', space=vmem, size = 0x400, scoped, tag = 'output window, operand 1, single buffered']
    #allocation3 [shape = 's32[1]{0}', space=sflag, size = 0x4, scoped, tag = 'scoped memory for blip2_forward.5']
    %18 = vsyncpa [#allocation3], 0
    // Predicated region
    $region2: #{blip2_forward.5} parent=1 // pred_check
      _
    $region3: #{blip2_forward.5} parent=1 // pred_check_branch
      %20 = sbr.rel (0) target = $region5
    $region4: #{blip2_forward.5} parent=1 // pred_region
      _
    $region5: #{blip2_forward.5} parent=1 // pred_fallthru
      _
    // Predicated region
    $region6: #{blip2_forward.5} parent=1 // pred_check
      _
    $region7: #{blip2_forward.5} parent=1 // pred_check_branch
      %22 = sbr.rel (0) target = $region9
    $region8: #{blip2_forward.5} parent=1 // pred_region
      _
    $region9: #{blip2_forward.5} parent=1 // pred_fallthru
      _
    // Predicated region
    $region10: #{blip2_forward.5} parent=1 // pred_check
      _
    $region11: #{blip2_forward.5} parent=1 // pred_check_branch
      %24 = sbr.rel (0) target = $region13
    $region12: #{blip2_forward.5} parent=1 // pred_region
      _
    $region13: #{blip2_forward.5} parent=1 // pred_fallthru
      _
    // Predicated region
    $region14: #{blip2_forward.5} parent=1 // pred_check
      _
    $region15: #{blip2_forward.5} parent=1 // pred_check_branch
      %26 = sbr.rel (0) target = $region17
    $region16: #{blip2_forward.5} parent=1 // pred_region
      _
    $region17: #{blip2_forward.5} parent=1 // pred_fallthru
      _
    // Predicated region
    $region18: #{blip2_forward.5} parent=1 // pred_check
      _
    $region19: #{blip2_forward.5} parent=1 // pred_check_branch
      %28 = sbr.rel (0) target = $region21
    $region20: #{blip2_forward.5} parent=1 // pred_region
      _
    $region21: #{blip2_forward.5} parent=1 // pred_fallthru
      _
    // Predicated region
    $region22: #{blip2_forward.5} parent=1 // pred_check
      _
    $region23: #{blip2_forward.5} parent=1 // pred_check_branch
      %30 = sbr.rel (0) target = $region25
    $region24: #{blip2_forward.5} parent=1 // pred_region
      _
    $region25: #{blip2_forward.5} parent=1 // pred_fallthru
      _
    // Predicated region
    $region26: #{blip2_forward.5} parent=1 // pred_check
      _
    $region27: #{blip2_forward.5} parent=1 // pred_check_branch
      %32 = sbr.rel (0) target = $region29
    $region28: #{blip2_forward.5} parent=1 // pred_region
      _
    $region29: #{blip2_forward.5} parent=1 // pred_fallthru
      _
    // Predicated region
    $region30: #{blip2_forward.5} parent=1 // pred_check
      _
    $region31: #{blip2_forward.5} parent=1 // pred_check_branch
      %34 = sbr.rel (0) target = $region33
    $region32: #{blip2_forward.5} parent=1 // pred_region
      _
    $region33: #{blip2_forward.5} parent=1 // pred_fallthru
      _
    // Predicated region
    $region34: #{blip2_forward.5} parent=1 // pred_check
      _
    $region35: #{blip2_forward.5} parent=1 // pred_check_branch
      %36 = sbr.rel (0) target = $region37
    $region36: #{blip2_forward.5} parent=1 // pred_region
      _
    $region37: #{blip2_forward.5} parent=1 // pred_fallthru
      _
    // Predicated region
    $region38: #{blip2_forward.5} parent=1 // pred_check
      _
    $region39: #{blip2_forward.5} parent=1 // pred_check_branch
      %38 = sbr.rel (0) target = $region41
    $region40: #{blip2_forward.5} parent=1 // pred_region
      _
    $region41: #{blip2_forward.5} parent=1 // pred_fallthru
      _
    // Predicated region
    $region42: #{blip2_forward.5} parent=1 // pred_check
      _
    $region43: #{blip2_forward.5} parent=1 // pred_check_branch
      %40 = sbr.rel (0) target = $region45
    $region44: #{blip2_forward.5} parent=1 // pred_region
      _
    $region45: #{blip2_forward.5} parent=1 // pred_fallthru
      _
    %v42 = vld [vmem:[%s4] sm:$0xf]
    %v43 = vld [vmem:[%s4 + $0x4] sm:$0xf]
    %v44 = vld [vmem:[%s4 + $0x8] sm:$0xf]
    %v45 = vld [vmem:[%s4 + $0xc] sm:$0xf]
    %v46 = vld [vmem:[%s5] sm:$0x1]
    %v47 = vunpack.c.l.bf16 %v46
    %v48 = vld [vmem:[%s6] sm:$0xf]
    %v49 = vld [vmem:[%s6 + $0x4] sm:$0xf]
    %v50 = vld [vmem:[%s6 + $0x8] sm:$0xf]
    %v51 = vld [vmem:[%s6 + $0xc] sm:$0xf]
    %v52 = vld [vmem:[%s7] sm:$0xf]
    %v53 = vld [vmem:[%s7 + $0x4] sm:$0xf]
    %v54 = vld [vmem:[%s7 + $0x8] sm:$0xf]
    %v55 = vld [vmem:[%s7 + $0xc] sm:$0xf]
    %v56 = vld [vmem:[%s8] sm:$0xf]
    %v57 = vld [vmem:[%s8 + $0x4] sm:$0xf]
    %v58 = vld [vmem:[%s8 + $0x8] sm:$0xf]
    %v59 = vld [vmem:[%s8 + $0xc] sm:$0xf]
    %v60 = vld [vmem:[%s9] sm:$0xf]
    %v61 = vld [vmem:[%s9 + $0x4] sm:$0xf]
    %v62 = vld [vmem:[%s9 + $0x8] sm:$0xf]
    %v63 = vld [vmem:[%s9 + $0xc] sm:$0xf]
    %v64 = vld [vmem:[%s10] sm:$0xf]
    %v65 = vld [vmem:[%s10 + $0x4] sm:$0xf]
    %v66 = vld [vmem:[%s10 + $0x8] sm:$0xf]
    %v67 = vld [vmem:[%s10 + $0xc] sm:$0xf]
    %v68 = vld [vmem:[%s10 + $0x10] sm:$0xf]
    %v69 = vld [vmem:[%s10 + $0x14] sm:$0xf]
    %v70 = vld [vmem:[%s10 + $0x18] sm:$0xf]
    %v71 = vld [vmem:[%s10 + $0x1c] sm:$0xf]
    %v72 = vlaneseq
    %v73 = vand.u32 %v72, 127
    %v74 = vld [vmem:[%s0] sm:$0xf]
    %v75 = vld [vmem:[%s0 + $0x4] sm:$0x7]
    %v76 = vperm.slane %v47, 0
    %v79 = vunpack.c.l.b16 %v74
    %v80 = vunpack.c.l.b16 %v75
    %v81 = vpack.c.b16 %v80, %v79
    %v86 = vunpack.c.l.b16 %v42
    %v87 = vunpack.c.l.b16 %v43
    %v88 = vunpack.c.l.b16 %v44
    %v89 = vunpack.c.l.b16 %v45
    %v90 = vpack.c.b16 %v87, %v86
    %v91 = vpack.c.b16 %v89, %v88
    %vm94 = vcmask 261120
    %v96 = vsel %vm94, %v81, 0
    %98 = vmatpush.bf16.msra.mxu0 0
    %99 = vmatpush.bf16.msra.mxu0 0
    %100 = vmatpush.bf16.msra.mxu0 0
    %101 = vmatpush.bf16.msra.mxu0 0
    %102 = vmatpush.bf16.msra.mxu0 0
    %103 = vmatpush.bf16.msra.mxu0 0
    %104 = vmatpush.bf16.msra.mxu0 %v91
    %105 = vmatpush.bf16.msra.mxu0 %v90
    %106 = vmatmul.bf16.gmra.mxu0 %v96
    %v107 = vpop.f32.mrf.mxu0
    %v108 = vadd.f32 %v76, %v107
    %v109 = vpop.f32.mrf.mxu0
    %v110 = vadd.f32 %v76, %v109
    %111 = vdwg.mxu0
    %v112 = vpack.c.bf16 %v110, %v108
    %v113 = vld [vmem:[%s2] sm:$0x7]
    %v114 = vld [vmem:[%s1] sm:$0x1]
    %v119 = vunpack.c.l.b16 %v48
    %v120 = vunpack.c.l.b16 %v49
    %v121 = vunpack.c.l.b16 %v50
    %v122 = vunpack.c.l.b16 %v51
    %v123 = vpack.c.b16 %v120, %v119
    %v124 = vpack.c.b16 %v122, %v121
    %v128 = vsel %vm94, %v113, 0
    %130 = vmatpush.bf16.msra.mxu0 0
    %131 = vmatpush.bf16.msra.mxu0 0
    %132 = vmatpush.bf16.msra.mxu0 0
    %133 = vmatpush.bf16.msra.mxu0 0
    %134 = vmatpush.bf16.msra.mxu0 0
    %135 = vmatpush.bf16.msra.mxu0 0
    %136 = vmatpush.bf16.msra.mxu0 %v124
    %137 = vmatpush.bf16.msra.mxu0 %v123
    %138 = vmatmul.bf16.gmra.mxu0 %v128
    %v139 = vpop.f32.mrf.mxu0
    %v140 = vadd.f32 0.0, %v139
    %v141 = vpop.f32.mrf.mxu0
    %142 = vdwg.mxu0
    %v143 = vpack.c.bf16 %v140, %v140
    %v148 = vunpack.c.l.b16 %v52
    %v149 = vunpack.c.l.b16 %v53
    %v150 = vunpack.c.l.b16 %v54
    %v151 = vunpack.c.l.b16 %v55
    %v152 = vpack.c.b16 %v149, %v148
    %v153 = vpack.c.b16 %v151, %v150
    %v157 = vsel %vm94, %v112, 0
    %159 = vmatpush.bf16.msra.mxu0 0
    %160 = vmatpush.bf16.msra.mxu0 0
    %161 = vmatpush.bf16.msra.mxu0 0
    %162 = vmatpush.bf16.msra.mxu0 0
    %163 = vmatpush.bf16.msra.mxu0 0
    %164 = vmatpush.bf16.msra.mxu0 0
    %165 = vmatpush.bf16.msra.mxu0 %v153
    %166 = vmatpush.bf16.msra.mxu0 %v152
    %167 = vmatmul.bf16.gmra.mxu0 %v157
    %v168 = vpop.f32.mrf.mxu0
    %v169 = vadd.f32 0.0, %v168
    %v170 = vpop.f32.mrf.mxu0
    %v171 = vadd.f32 0.0, %v170
    %172 = vdwg.mxu0
    %v173 = vpack.c.bf16 %v171, %v169
    %v178 = vunpack.c.l.b16 %v56
    %v179 = vunpack.c.l.b16 %v57
    %v180 = vunpack.c.l.b16 %v58
    %v181 = vunpack.c.l.b16 %v59
    %v182 = vpack.c.b16 %v179, %v178
    %v183 = vpack.c.b16 %v181, %v180
    %186 = vmatpush.bf16.msra.mxu0 0
    %187 = vmatpush.bf16.msra.mxu0 0
    %188 = vmatpush.bf16.msra.mxu0 0
    %189 = vmatpush.bf16.msra.mxu0 0
    %190 = vmatpush.bf16.msra.mxu0 0
    %191 = vmatpush.bf16.msra.mxu0 0
    %192 = vmatpush.bf16.msra.mxu0 %v183
    %193 = vmatpush.bf16.msra.mxu0 %v182
    %194 = vmatmul.bf16.gmra.mxu0 %v157
    %v195 = vpop.f32.mrf.mxu0
    %v196 = vadd.f32 0.0, %v195
    %v197 = vpop.f32.mrf.mxu0
    %v198 = vadd.f32 0.0, %v197
    %199 = vdwg.mxu0
    %v200 = vpack.c.bf16 %v198, %v196
    %v201 = vsub.f32 %v114, 1.0
    %v202 = vmul.f32 %v201, 1e+09
    %v204 = vperm.slane %v202, 0
    %v207 = vsel %vm94, %v143, 0
    %v210 = vsel %vm94, %v173, 0
    %212 = vmatpush.bf16.xpose.msra.mxu0 0
    %213 = vmatpush.bf16.xpose.msra.mxu0 0
    %214 = vmatpush.bf16.xpose.msra.mxu0 0
    %215 = vmatpush.bf16.xpose.msra.mxu0 0
    %216 = vmatpush.bf16.xpose.msra.mxu0 0
    %217 = vmatpush.bf16.xpose.msra.mxu0 0
    %218 = vmatpush.bf16.xpose.msra.mxu0 0
    %219 = vmatpush.bf16.xpose.msra.mxu0 %v210
    %220 = vmatmul.bf16.gmra.mxu0 %v207
    %v221 = vpop.f32.mrf.mxu0
    %v222 = vadd.f32 %v204, %v221
    %v223 = vpop.f32.mrf.mxu0
    %224 = vdwg.mxu0
    %vm225 = vcmask 110592
    %v226 = vsel %vm225, %v222, -inf
    %227 = vmax.xlane.f32.xlu0 %v226
    %v228 = vpop.xlane.xlu0 %227
    %v229 = vsub.f32 %v222, %v228
    %v230 = vmul.f32 %v229, 1.442695
    %v231 = vpow.pop %v230
    %v232 = vsel %vm225, %v231, 0.0
    %233 = vadd.xlane.f32.xlu0 %v232
    %v234 = vpop.xlane.xlu0 %233
    %v235 = vrcp.pop %v234
    %v236 = vmul.f32 %v231, %v235
    %v237 = vpack.c.bf16 %v236, %v236
    %vm238 = vcmask 113664
    %v240 = vsel %vm238, %v237, 0
    %vm242 = vcmask 1046528
    %v244 = vsel %vm242, %v200, 0
    %246 = vmatpush.bf16.msra.mxu0 0
    %247 = vmatpush.bf16.msra.mxu0 0
    %248 = vmatpush.bf16.msra.mxu0 0
    %249 = vmatpush.bf16.msra.mxu0 0
    %250 = vmatpush.bf16.msra.mxu0 0
    %251 = vmatpush.bf16.msra.mxu0 0
    %252 = vmatpush.bf16.msra.mxu0 0
    %253 = vmatpush.bf16.msra.mxu0 %v244
    %254 = vmatmul.bf16.gmra.mxu0 %v240
    %v255 = vpop.f32.mrf.mxu0
    %v256 = vadd.f32 0.0, %v255
    %v257 = vpop.f32.mrf.mxu0
    %258 = vdwg.mxu0
    %v259 = vpack.c.bf16 %v256, %v256
    %v264 = vunpack.c.l.b16 %v60
    %v265 = vunpack.c.l.b16 %v61
    %v266 = vunpack.c.l.b16 %v62
    %v267 = vunpack.c.l.b16 %v63
    %v268 = vpack.c.b16 %v265, %v264
    %v269 = vpack.c.b16 %v267, %v266
    %v273 = vsel %vm94, %v259, 0
    %275 = vmatpush.bf16.msra.mxu0 0
    %276 = vmatpush.bf16.msra.mxu0 0
    %277 = vmatpush.bf16.msra.mxu0 0
    %278 = vmatpush.bf16.msra.mxu0 0
    %279 = vmatpush.bf16.msra.mxu0 0
    %280 = vmatpush.bf16.msra.mxu0 0
    %281 = vmatpush.bf16.msra.mxu0 %v269
    %282 = vmatpush.bf16.msra.mxu0 %v268
    %283 = vmatmul.bf16.gmra.mxu0 %v273
    %v284 = vpop.f32.mrf.mxu0
    %v285 = vadd.f32 0.0, %v284
    %v286 = vpop.f32.mrf.mxu0
    %287 = vdwg.mxu0
    %v288 = vpack.c.bf16 %v285, %v285
    %v297 = vunpack.c.l.b16 %v64
    %v298 = vunpack.c.l.b16 %v65
    %v299 = vunpack.c.l.b16 %v66
    %v300 = vunpack.c.l.b16 %v67
    %v301 = vunpack.c.l.b16 %v68
    %v302 = vunpack.c.l.b16 %v69
    %v303 = vunpack.c.l.b16 %v70
    %v304 = vunpack.c.l.b16 %v71
    %v305 = vpack.c.b16 %v298, %v297
    %v306 = vpack.c.b16 %v300, %v299
    %v307 = vpack.c.b16 %v302, %v301
    %v308 = vpack.c.b16 %v304, %v303
    %v310 = vsel %vm94, %v288, 0
    %v313 = vsel %vm94, %v305, 0
    %v316 = vsel %vm94, %v306, 0
    %v319 = vsel %vm94, %v307, 0
    %v322 = vsel %vm94, %v308, 0
    %324 = vmatpush.bf16.xpose.msra.mxu0 0
    %325 = vmatpush.bf16.xpose.msra.mxu0 0
    %326 = vmatpush.bf16.xpose.msra.mxu0 0
    %327 = vmatpush.bf16.xpose.msra.mxu0 0
    %328 = vmatpush.bf16.xpose.msra.mxu0 %v322
    %329 = vmatpush.bf16.xpose.msra.mxu0 %v319
    %330 = vmatpush.bf16.xpose.msra.mxu0 %v316
    %331 = vmatpush.bf16.xpose.msra.mxu0 %v313
    %332 = vmatmul.bf16.gmra.mxu0 %v310
    %v333 = vpop.f32.mrf.mxu0
    %v334 = vadd.f32 0.0, %v333
    %v335 = vpop.f32.mrf.mxu0
    %336 = vdwg.mxu0
    %vm337 = vcmask 520192
    %338 = vst.msk [vmem:[%s11] sm:$0x1f] %vm337, %v334
    %v339 = vld [vmem:[%s3] sm:$0x1f]
    %v340 = vsel %vm337, %v334, -inf
    %341 = vmax.xlane.f32.xlu0 %v340
    %v342 = vpop.xlane.xlu0 %341
    %v343 = vsub.f32 %v334, %v342
    %v344 = vmul.f32 %v343, 1.442695
    %v345 = vpow.pop %v344
    %v346 = vsel %vm337, %v345, 0.0
    %347 = vadd.xlane.f32.xlu0 %v346
    %v348 = vpop.xlane.xlu0 %347
    %v349 = vlog2.pop %v348
    %v350 = vmul.f32 %v349, 0.6931472
    %351 = vset.pattern.permute.xlu0 0
    %352 = vperm.xlu0 %351, %v339
    %v353 = vpop.permute.xlu0 %352
    %vm354 = vcmp.eq.s32.totalorder %v73, %v353
    %v355 = vsub.f32 %v343, %v350
    %v356 = vsel %vm354, %v355, 0.0
    %v357 = vsel %vm337, %v356, 0.0
    %358 = vadd.xlane.f32.xlu0 %v357
    %v359 = vpop.xlane.xlu0 %358
    %vm360 = vcmp.ne.s32.totalorder %v339, 4294967196
    %v361 = vsel %vm360, 1, 0
    %v362 = vcvt.s32.f32 %v361
    %v363 = vmul.f32 %v362, %v359
    %vm364 = vcmask 4096
    %v365 = vsel %vm364, %v363, 0.0
    %366 = vadd.xlane.f32.xlu0 %v365
    %v367 = vpop.xlane.xlu0 %366
    %v368 = vrot.slane %v367, 4
    %v369 = vadd.f32 %v367, %v368
    %v370 = vrot.slane %v369, 2
    %v371 = vadd.f32 %v369, %v370
    %v372 = vrot.slane %v371, 1
    %v373 = vadd.f32 %v371, %v372
    %s374 = vtos %v373
    %v375 = vstv %s374
    %v376 = vsub.f32 0.0, %v375
    %v377 = vsel %vm364, %v362, 0.0
    %378 = vadd.xlane.f32.xlu0 %v377
    %v379 = vpop.xlane.xlu0 %378
    %v380 = vrot.slane %v379, 4
    %v381 = vadd.f32 %v379, %v380
    %v382 = vrot.slane %v381, 2
    %v383 = vadd.f32 %v381, %v382
    %v384 = vrot.slane %v383, 1
    %v385 = vadd.f32 %v383, %v384
    %s386 = vtos %v385
    %v387 = vstv %s386
    %v388 = vadd.f32 %v387, 0.0
    %s389 = scalar_lea.vmem %s0, 8
    %v390 = vld [vmem:[%s389] sm:$0xf]
    %v391 = vld [vmem:[%s389 + $0x4] sm:$0x7]
    %v394 = vunpack.c.l.b16 %v390
    %v395 = vunpack.c.l.b16 %v391
    %v396 = vpack.c.b16 %v395, %v394
    %v398 = vsel %vm94, %v396, 0
    %400 = vmatpush.bf16.msra.mxu0 0
    %401 = vmatpush.bf16.msra.mxu0 0
    %402 = vmatpush.bf16.msra.mxu0 0
    %403 = vmatpush.bf16.msra.mxu0 0
    %404 = vmatpush.bf16.msra.mxu0 0
    %405 = vmatpush.bf16.msra.mxu0 0
    %406 = vmatpush.bf16.msra.mxu0 %v91
    %407 = vmatpush.bf16.msra.mxu0 %v90
    %408 = vmatmul.bf16.gmra.mxu0 %v398
    %v409 = vpop.f32.mrf.mxu0
    %v410 = vadd.f32 %v76, %v409
    %v411 = vpop.f32.mrf.mxu0
    %v412 = vadd.f32 %v76, %v411
    %413 = vdwg.mxu0
    %v414 = vpack.c.bf16 %v412, %v410
    %s415 = scalar_lea.vmem %s2, 4
    %v416 = vld [vmem:[%s415] sm:$0x7]
    %s417 = scalar_lea.vmem %s1, 1
    %v418 = vld [vmem:[%s417] sm:$0x1]
    %v420 = vsel %vm94, %v416, 0
    %422 = vmatpush.bf16.msra.mxu0 0
    %423 = vmatpush.bf16.msra.mxu0 0
    %424 = vmatpush.bf16.msra.mxu0 0
    %425 = vmatpush.bf16.msra.mxu0 0
    %426 = vmatpush.bf16.msra.mxu0 0
    %427 = vmatpush.bf16.msra.mxu0 0
    %428 = vmatpush.bf16.msra.mxu0 %v124
    %429 = vmatpush.bf16.msra.mxu0 %v123
    %430 = vmatmul.bf16.gmra.mxu0 %v420
    %v431 = vpop.f32.mrf.mxu0
    %v432 = vadd.f32 0.0, %v431
    %v433 = vpop.f32.mrf.mxu0
    %434 = vdwg.mxu0
    %v435 = vpack.c.bf16 %v432, %v432
    %v437 = vsel %vm94, %v414, 0
    %439 = vmatpush.bf16.msra.mxu0 0
    %440 = vmatpush.bf16.msra.mxu0 0
    %441 = vmatpush.bf16.msra.mxu0 0
    %442 = vmatpush.bf16.msra.mxu0 0
    %443 = vmatpush.bf16.msra.mxu0 0
    %444 = vmatpush.bf16.msra.mxu0 0
    %445 = vmatpush.bf16.msra.mxu0 %v153
    %446 = vmatpush.bf16.msra.mxu0 %v152
    %447 = vmatmul.bf16.gmra.mxu0 %v437
    %v448 = vpop.f32.mrf.mxu0
    %v449 = vadd.f32 0.0, %v448
    %v450 = vpop.f32.mrf.mxu0
    %v451 = vadd.f32 0.0, %v450
    %452 = vdwg.mxu0
    %v453 = vpack.c.bf16 %v451, %v449
    %454 = vmatpush.bf16.msra.mxu0 0
    %455 = vmatpush.bf16.msra.mxu0 0
    %456 = vmatpush.bf16.msra.mxu0 0
    %457 = vmatpush.bf16.msra.mxu0 0
    %458 = vmatpush.bf16.msra.mxu0 0
    %459 = vmatpush.bf16.msra.mxu0 0
    %460 = vmatpush.bf16.msra.mxu0 %v183
    %461 = vmatpush.bf16.msra.mxu0 %v182
    %462 = vmatmul.bf16.gmra.mxu0 %v437
    %v463 = vpop.f32.mrf.mxu0
    %v464 = vadd.f32 0.0, %v463
    %v465 = vpop.f32.mrf.mxu0
    %v466 = vadd.f32 0.0, %v465
    %467 = vdwg.mxu0
    %v468 = vpack.c.bf16 %v466, %v464
    %v469 = vsub.f32 %v418, 1.0
    %v470 = vmul.f32 %v469, 1e+09
    %v472 = vperm.slane %v470, 0
    %v475 = vsel %vm94, %v435, 0
    %v478 = vsel %vm94, %v453, 0
    %480 = vmatpush.bf16.xpose.msra.mxu0 0
    %481 = vmatpush.bf16.xpose.msra.mxu0 0
    %482 = vmatpush.bf16.xpose.msra.mxu0 0
    %483 = vmatpush.bf16.xpose.msra.mxu0 0
    %484 = vmatpush.bf16.xpose.msra.mxu0 0
    %485 = vmatpush.bf16.xpose.msra.mxu0 0
    %486 = vmatpush.bf16.xpose.msra.mxu0 0
    %487 = vmatpush.bf16.xpose.msra.mxu0 %v478
    %488 = vmatmul.bf16.gmra.mxu0 %v475
    %v489 = vpop.f32.mrf.mxu0
    %v490 = vadd.f32 %v472, %v489
    %v491 = vpop.f32.mrf.mxu0
    %492 = vdwg.mxu0
    %v493 = vsel %vm225, %v490, -inf
    %494 = vmax.xlane.f32.xlu0 %v493
    %v495 = vpop.xlane.xlu0 %494
    %v496 = vsub.f32 %v490, %v495
    %v497 = vmul.f32 %v496, 1.442695
    %v498 = vpow.pop %v497
    %v499 = vsel %vm225, %v498, 0.0
    %500 = vadd.xlane.f32.xlu0 %v499
    %v501 = vpop.xlane.xlu0 %500
    %v502 = vrcp.pop %v501
    %v503 = vmul.f32 %v498, %v502
    %v504 = vpack.c.bf16 %v503, %v503
    %v506 = vsel %vm238, %v504, 0
    %v509 = vsel %vm242, %v468, 0
    %511 = vmatpush.bf16.msra.mxu0 0
    %512 = vmatpush.bf16.msra.mxu0 0
    %513 = vmatpush.bf16.msra.mxu0 0
    %514 = vmatpush.bf16.msra.mxu0 0
    %515 = vmatpush.bf16.msra.mxu0 0
    %516 = vmatpush.bf16.msra.mxu0 0
    %517 = vmatpush.bf16.msra.mxu0 0
    %518 = vmatpush.bf16.msra.mxu0 %v509
    %519 = vmatmul.bf16.gmra.mxu0 %v506
    %v520 = vpop.f32.mrf.mxu0
    %v521 = vadd.f32 0.0, %v520
    %v522 = vpop.f32.mrf.mxu0
    %523 = vdwg.mxu0
    %v524 = vpack.c.bf16 %v521, %v521
    %v526 = vsel %vm94, %v524, 0
    %528 = vmatpush.bf16.msra.mxu0 0
    %529 = vmatpush.bf16.msra.mxu0 0
    %530 = vmatpush.bf16.msra.mxu0 0
    %531 = vmatpush.bf16.msra.mxu0 0
    %532 = vmatpush.bf16.msra.mxu0 0
    %533 = vmatpush.bf16.msra.mxu0 0
    %534 = vmatpush.bf16.msra.mxu0 %v269
    %535 = vmatpush.bf16.msra.mxu0 %v268
    %536 = vmatmul.bf16.gmra.mxu0 %v526
    %v537 = vpop.f32.mrf.mxu0
    %v538 = vadd.f32 0.0, %v537
    %v539 = vpop.f32.mrf.mxu0
    %540 = vdwg.mxu0
    %v541 = vpack.c.bf16 %v538, %v538
    %v543 = vsel %vm94, %v541, 0
    %545 = vmatpush.bf16.xpose.msra.mxu0 0
    %546 = vmatpush.bf16.xpose.msra.mxu0 0
    %547 = vmatpush.bf16.xpose.msra.mxu0 0
    %548 = vmatpush.bf16.xpose.msra.mxu0 0
    %549 = vmatpush.bf16.xpose.msra.mxu0 %v322
    %550 = vmatpush.bf16.xpose.msra.mxu0 %v319
    %551 = vmatpush.bf16.xpose.msra.mxu0 %v316
    %552 = vmatpush.bf16.xpose.msra.mxu0 %v313
    %553 = vmatmul.bf16.gmra.mxu0 %v543
    %v554 = vpop.f32.mrf.mxu0
    %v555 = vadd.f32 0.0, %v554
    %v556 = vpop.f32.mrf.mxu0
    %557 = vdwg.mxu0
    %s558 = scalar_lea.vmem %s11, 8
    %559 = vst.msk [vmem:[%s558] sm:$0x1f] %vm337, %v555
    %s560 = scalar_lea.vmem %s3, 8
    %v561 = vld [vmem:[%s560] sm:$0x1f]
    %v562 = vsel %vm337, %v555, -inf
    %563 = vmax.xlane.f32.xlu0 %v562
    %v564 = vpop.xlane.xlu0 %563
    %v565 = vsub.f32 %v555, %v564
    %v566 = vmul.f32 %v565, 1.442695
    %v567 = vpow.pop %v566
    %v568 = vsel %vm337, %v567, 0.0
    %569 = vadd.xlane.f32.xlu0 %v568
    %v570 = vpop.xlane.xlu0 %569
    %v571 = vlog2.pop %v570
    %v572 = vmul.f32 %v571, 0.6931472
    %573 = vset.pattern.permute.xlu0 0
    %574 = vperm.xlu0 %573, %v561
    %v575 = vpop.permute.xlu0 %574
    %vm576 = vcmp.eq.s32.totalorder %v73, %v575
    %v577 = vsub.f32 %v565, %v572
    %v578 = vsel %vm576, %v577, 0.0
    %v579 = vsel %vm337, %v578, 0.0
    %580 = vadd.xlane.f32.xlu0 %v579
    %v581 = vpop.xlane.xlu0 %580
    %vm582 = vcmp.ne.s32.totalorder %v561, 4294967196
    %v583 = vsel %vm582, 1, 0
    %v584 = vcvt.s32.f32 %v583
    %v585 = vmul.f32 %v584, %v581
    %v586 = vsel %vm364, %v585, 0.0
    %587 = vadd.xlane.f32.xlu0 %v586
    %v588 = vpop.xlane.xlu0 %587
    %v589 = vrot.slane %v588, 4
    %v590 = vadd.f32 %v588, %v589
    %v591 = vrot.slane %v590, 2
    %v592 = vadd.f32 %v590, %v591
    %v593 = vrot.slane %v592, 1
    %v594 = vadd.f32 %v592, %v593
    %s595 = vtos %v594
    %v596 = vstv %s595
    %v597 = vsub.f32 %v376, %v596
    %v598 = vsel %vm364, %v584, 0.0
    %599 = vadd.xlane.f32.xlu0 %v598
    %v600 = vpop.xlane.xlu0 %599
    %v601 = vrot.slane %v600, 4
    %v602 = vadd.f32 %v600, %v601
    %v603 = vrot.slane %v602, 2
    %v604 = vadd.f32 %v602, %v603
    %v605 = vrot.slane %v604, 1
    %v606 = vadd.f32 %v604, %v605
    %s607 = vtos %v606
    %v608 = vstv %s607
    %v609 = vadd.f32 %v388, %v608
    %v610 = vmax.f32 %v609, 1.0
    %v611 = vrcp.pop %v610
    %v612 = vmul.f32 %v610, %v611
    %v613 = vsub.f32 1.0, %v612
    %v614 = vmul.f32 %v611, %v613
    %v615 = vadd.f32 %v611, %v614
    %vm616 = vweird.f32 %v610
    %vm617 = vweird.f32 %v611
    %vm618 = vmor %vm616, %vm617
    %v619 = vsel %vm618, %v611, %v615
    %v620 = vand.u32 2147483647, %v610
    %vm621 = vcmp.eq.f32.partialorder %v620, 8.507059e+37
    %v622 = vand.u32 %v610, 2147483648
    %v623 = vor.u32 1.1754944e-38, %v622
    %v624 = vsel %vm621, %v623, %v619
    %v625 = vmul.f32 %v597, %v624
    %vm626 = vcmask 0
    %627 = vst.msk [vmem:[#allocation2] sm:$0x1] %vm626, %v625
    // Predicated region
    $region46: #{blip2_forward.5} parent=1 // pred_check
      _
    $region47: #{blip2_forward.5} parent=1 // pred_check_branch
      %629 = sbr.rel (0) target = $region49
    $region48: #{blip2_forward.5} parent=1 // pred_region
      _
    $region49: #{blip2_forward.5} parent=1 // pred_fallthru
      _
    // Predicated region
    $region50: #{blip2_forward.5} parent=1 // pred_check
      _
    $region51: #{blip2_forward.5} parent=1 // pred_check_branch
      %631 = sbr.rel (0) target = $region53
    $region52: #{blip2_forward.5} parent=1 // pred_region
      %633 = vsyncadd [#allocation3], 0
      %s635 = sshll.u32 [#allocation2], 4
      %s636 = int_to_ptr.vmem [resolvable:$true] %s635
      %s637 = sshll.u32 %s12, 4
      %s638 = int_to_ptr.hbm [resolvable:$true] %s637
      %640 = dma.vmem_to_hbm [thread:$0]  %s636, 16, %s638, [#allocation3]
    $region53: #{blip2_forward.5} parent=1 // pred_fallthru
      _
    // Predicated region
    $region54: #{blip2_forward.5} parent=1 // pred_check
      _
    $region55: #{blip2_forward.5} parent=1 // pred_check_branch
      %642 = sbr.rel (0) target = $region57
    $region56: #{blip2_forward.5} parent=1 // pred_region
      _
    $region57: #{blip2_forward.5} parent=1 // pred_fallthru
      _
    // Predicated region
    $region58: #{blip2_forward.5} parent=1 // pred_check
      _
    $region59: #{blip2_forward.5} parent=1 // pred_check_branch
      %644 = sbr.rel (0) target = $region61
    $region60: #{blip2_forward.5} parent=1 // pred_region
      %646 = dma.done [#allocation3], 16
    $region61: #{blip2_forward.5} parent=1 // pred_fallthru
      _
    %647 = vsyncpa [#allocation3], 1

</llo_original>
